<compile_context>
chip_gen: v7x
topology: tpu7x:2x2x1
jax: 0.10.0
libtpu: 0.0.40
codegen_flags: <defaults>
</compile_context>

<pallas_src>
import functools

import jax
import jax.numpy as jnp
from jax.experimental import pallas as pl
from jax.experimental.pallas import tpu as pltpu


# ---------------------------------------------------------------------------
# Tiling helpers
# ---------------------------------------------------------------------------
def _round_up(x, m):
    return (x + m - 1) // m * m


def _m_tiling(M):
    Mp = _round_up(M, 8)
    for t in (256, 128):
        if Mp % t == 0:
            return Mp, t
    if Mp <= 256:
        return Mp, Mp
    Mp = _round_up(M, 128)
    return Mp, 128


def _n_tiling(N):
    if N < 128:
        return N, N
    Np = _round_up(N, 128)
    return Np, 128


def _k_tiling(K):
    if K < 128:
        return K, K
    for t in (512, 256, 128):
        Kp = _round_up(K, t)
        if Kp - K <= 128:          # accept at most one tile-row of zero padding
            return Kp, t
    return _round_up(K, 128), 128


def _pad2(x, rows, cols):
    r, c = x.shape
    if (r, c) == (rows, cols):
        return x
    return jnp.pad(x, ((0, rows - r), (0, cols - c)))


# ---------------------------------------------------------------------------
# Pallas kernels
# ---------------------------------------------------------------------------
def _mm_kernel(a_ref, b_ref, bias_ref, *rest, relu, has_res):
    """Tiled bf16 matmul (f32 accum) with fused bias / residual / ReLU epilogue."""
    if has_res:
        res_ref, o_ref, acc_ref = rest
    else:
        res_ref = None
        o_ref, acc_ref = rest

    @pl.when(pl.program_id(2) == 0)
    def _():
        acc_ref[...] = jnp.zeros_like(acc_ref)

    acc_ref[...] += jnp.dot(a_ref[...], b_ref[...],
                            preferred_element_type=jnp.float32)

    @pl.when(pl.program_id(2) == pl.num_programs(2) - 1)
    def _():
        r = acc_ref[...] + bias_ref[...].astype(jnp.float32)
        if has_res:
            r = r + res_ref[...].astype(jnp.float32)
        if relu:
            r = jnp.maximum(r, 0.0)
        o_ref[...] = r.astype(o_ref.dtype)


def matmul_bias_act(a, w, bias, residual=None, relu=False,
                    out_dtype=jnp.bfloat16):
    """(M,K) @ (K,N) + bias[N] (+ residual[M,N]), optional ReLU, bf16 MXU path."""
    M, K = a.shape
    K2, N = w.shape
    assert K == K2
    Mp, TM = _m_tiling(M)
    Np, TN = _n_tiling(N)
    Kp, TK = _k_tiling(K)

    ap = _pad2(a.astype(jnp.bfloat16), Mp, Kp)
    wp = _pad2(w.astype(jnp.bfloat16), Kp, Np)
    bp = _pad2(bias.astype(jnp.float32).reshape(1, N), 1, Np)

    in_specs = [
        pl.BlockSpec((TM, TK), lambda i, j, k: (i, k)),
        pl.BlockSpec((TK, TN), lambda i, j, k: (k, j)),
        pl.BlockSpec((1, TN), lambda i, j, k: (0, j)),
    ]
    inputs = [ap, wp, bp]
    has_res = residual is not None
    if has_res:
        rp = _pad2(residual.astype(jnp.bfloat16), Mp, Np)
        in_specs.append(pl.BlockSpec((TM, TN), lambda i, j, k: (i, j)))
        inputs.append(rp)

    out = pl.pallas_call(
        functools.partial(_mm_kernel, relu=relu, has_res=has_res),
        out_shape=jax.ShapeDtypeStruct((Mp, Np), out_dtype),
        grid_spec=pltpu.PrefetchScalarGridSpec(
            num_scalar_prefetch=0,
            grid=(Mp // TM, Np // TN, Kp // TK),
            in_specs=in_specs,
            out_specs=pl.BlockSpec((TM, TN), lambda i, j, k: (i, j)),
            scratch_shapes=[pltpu.VMEM((TM, TN), jnp.float32)],
        ),
        compiler_params=pltpu.CompilerParams(
            dimension_semantics=("parallel", "parallel", "arbitrary"),
            vmem_limit_bytes=32 * 1024 * 1024),
    )(*inputs)
    if (Mp, Np) != (M, N):
        out = out[:M, :N]
    return out


def _avgpool_kernel(x_ref, o_ref, acc_ref, *, inv_s):
    @pl.when(pl.program_id(0) == 0)
    def _():
        acc_ref[...] = jnp.zeros_like(acc_ref)

    acc_ref[...] += jnp.sum(x_ref[...].astype(jnp.float32), axis=1)

    @pl.when(pl.program_id(0) == pl.num_programs(0) - 1)
    def _():
        o_ref[...] = acc_ref[...] * inv_s


def global_avgpool(x):
    """(N, S, C) bf16 -> (N, C) f32 mean over spatial-temporal positions (tiled in S)."""
    N, S, C = x.shape
    if S <= 2048:
        Sp, TS = S, S
    else:
        Sp = _round_up(S, 8)
        TS = 8
        for t in (2048, 1024, 512, 256, 128, 64, 32, 16, 8):
            if Sp % t == 0:
                TS = t
                break
    xs = x if Sp == S else jnp.pad(x, ((0, 0), (0, Sp - S), (0, 0)))
    return pl.pallas_call(
        functools.partial(_avgpool_kernel, inv_s=1.0 / float(S)),
        out_shape=jax.ShapeDtypeStruct((N, C), jnp.float32),
        grid_spec=pltpu.PrefetchScalarGridSpec(
            num_scalar_prefetch=0,
            grid=(Sp // TS,),
            in_specs=[pl.BlockSpec((N, TS, C), lambda s: (0, s, 0))],
            out_specs=pl.BlockSpec((N, C), lambda s: (0, 0)),
            scratch_shapes=[pltpu.VMEM((N, C), jnp.float32)],
        ),
        compiler_params=pltpu.CompilerParams(
            dimension_semantics=("arbitrary",),
            vmem_limit_bytes=32 * 1024 * 1024),
    )(xs)


def _heads_kernel(f_ref, w8_ref, b8_ref, wa_ref, ba_ref, w2_ref, b2_ref,
                  clip_ref, act_ref, pred_ref):
    f = f_ref[...]
    clip = jnp.dot(f, w8_ref[...], preferred_element_type=jnp.float32) + b8_ref[...]
    clip_ref[...] = jnp.maximum(clip, 0.0)
    act = jnp.dot(f, wa_ref[...], preferred_element_type=jnp.float32) + ba_ref[...]
    act_ref[...] = act
    pred = jnp.dot(act.astype(w2_ref.dtype), w2_ref[...],
                   preferred_element_type=jnp.float32) + b2_ref[...]
    pred_ref[...] = pred


def fc_heads(feat, params):
    """Fused fc8 / fc_act / fc2_act heads on the (N, 512) pooled features."""
    N, D = feat.shape
    Np8 = _round_up(N, 8)
    f = feat.astype(jnp.bfloat16)
    if Np8 != N:
        f = jnp.pad(f, ((0, Np8 - N), (0, 0)))
    w8, b8 = params["fc8"]
    wa, ba = params["fc_act"]
    w2, b2 = params["fc2_act"]
    nc = w2.shape[1]
    clip, act, pred = pl.pallas_call(
        _heads_kernel,
        out_shape=(jax.ShapeDtypeStruct((Np8, D), jnp.float32),
                   jax.ShapeDtypeStruct((Np8, D), jnp.float32),
                   jax.ShapeDtypeStruct((Np8, nc), jnp.float32)),
        compiler_params=pltpu.CompilerParams(
            vmem_limit_bytes=32 * 1024 * 1024),
    )(f, w8, b8.reshape(1, D), wa, ba.reshape(1, D), w2, b2.reshape(1, nc))
    return clip[:N], act[:N], pred[:N]


# ---------------------------------------------------------------------------
# Conv3d (BN folded) = im2col (glue, bf16) + Pallas matmul with fused epilogue
# ---------------------------------------------------------------------------
def conv3d_folded(x, w, b, stride, padding, relu, residual=None):
    """x: (N,T,H,W,Cin) bf16; w: (KT,KH,KW,Cin,Cout) bf16; b: (Cout,) f32.
    residual: optional flattened (N*To*Ho*Wo, Cout) added (then ReLU'd) in-epilogue."""
    # TODO(synk): replace im2col with an implicit-GEMM kernel that streams x via a
    # tap-folded K grid axis / scalar-prefetched offsets to avoid the KT*KH*KW-fold
    # activation materialization.
    N, T, H, W, Cin = x.shape
    KT, KH, KW, _, Cout = w.shape
    st, sh, sw = stride
    pt, ph, pw = padding
    xp = jnp.pad(x, ((0, 0), (pt, pt), (ph, ph), (pw, pw), (0, 0)))
    To = (T + 2 * pt - KT) // st + 1
    Ho = (H + 2 * ph - KH) // sh + 1
    Wo = (W + 2 * pw - KW) // sw + 1

    cols = []
    for kt in range(KT):
        for kh in range(KH):
            for kw in range(KW):
                cols.append(xp[:, kt:kt + (To - 1) * st + 1:st,
                               kh:kh + (Ho - 1) * sh + 1:sh,
                               kw:kw + (Wo - 1) * sw + 1:sw, :])
    K = KT * KH * KW * Cin
    Kp, _ = _k_tiling(K)
    if Kp > K:   # bake the K padding into the concat (avoids a second A copy)
        cols.append(jnp.zeros((N, To, Ho, Wo, Kp - K), x.dtype))
    patches = jnp.concatenate(cols, axis=-1)            # (N,To,Ho,Wo,Kp)
    A = patches.reshape(N * To * Ho * Wo, Kp)
    Wm = w.reshape(K, Cout)
    if Kp > K:
        Wm = jnp.pad(Wm, ((0, Kp - K), (0, 0)))
    out = matmul_bias_act(A, Wm, b, residual=residual, relu=relu)
    return out.reshape(N, To, Ho, Wo, Cout)


# ---------------------------------------------------------------------------
# Parameter init (deterministic, eval-mode BN folded into conv weight/bias)
# ---------------------------------------------------------------------------
def init_params(key, num_classes=4):
    keys = iter(jax.random.split(key, 128))

    def conv_bn(cin, cout, k):
        fan_in = cin * k[0] * k[1] * k[2]
        w = jax.random.normal(next(keys), (k[0], k[1], k[2], cin, cout),
                              jnp.float32) * jnp.sqrt(2.0 / fan_in)
        gamma = 1.0 + 0.1 * jax.random.normal(next(keys), (cout,), jnp.float32)
        beta = 0.1 * jax.random.normal(next(keys), (cout,), jnp.float32)
        rmean = jnp.zeros((cout,), jnp.float32)
        rvar = jnp.ones((cout,), jnp.float32)
        eps = 1e-5
        scale = gamma / jnp.sqrt(rvar + eps)
        return (w * scale).astype(jnp.bfloat16), (beta - rmean * scale)  # folded

    def linear(cin, cout):
        bound = 1.0 / (cin ** 0.5)
        w = jax.random.uniform(next(keys), (cin, cout), jnp.float32,
                               minval=-bound, maxval=bound)
        b = jax.random.uniform(next(keys), (cout,), jnp.float32,
                               minval=-bound, maxval=bound)
        return w.astype(jnp.bfloat16), b

    def make_layer(cin, cout, stride):
        b1 = {"conv1": conv_bn(cin, cout, (3, 3, 3)),
              "conv2": conv_bn(cout, cout, (3, 3, 3))}
        if stride != 1 or cin != cout:
            b1["down"] = conv_bn(cin, cout, (1, 1, 1))
        b2 = {"conv1": conv_bn(cout, cout, (3, 3, 3)),
              "conv2": conv_bn(cout, cout, (3, 3, 3))}
        return [b1, b2]

    params = {
        "stem": conv_bn(3, 64, (3, 7, 7)),
        "layer1": make_layer(64, 64, 1),
        "layer2": make_layer(64, 128, 2),
        "layer3": make_layer(128, 256, 2),
        "layer4": make_layer(256, 512, 2),
        "fc8": linear(512, 512),
        "fc_act": linear(512, 512),
        "fc2_act": linear(512, num_classes),
    }
    return params


# ---------------------------------------------------------------------------
# Forward (matches r2plus1d_net.forward semantics)
# ---------------------------------------------------------------------------
def basic_block(x, p, stride):
    w1, b1 = p["conv1"]
    out = conv3d_folded(x, w1, b1, (stride,) * 3, (1, 1, 1), relu=True)
    if "down" in p:
        wd, bd = p["down"]
        residual = conv3d_folded(x, wd, bd, (stride,) * 3, (0, 0, 0), relu=False)
    else:
        residual = x
    w2, b2 = p["conv2"]
    C = residual.shape[-1]
    # conv2 + residual add + ReLU fused into one matmul epilogue.
    out = conv3d_folded(out, w2, b2, (1, 1, 1), (1, 1, 1), relu=True,
                        residual=residual.reshape(-1, C))
    return out


def forward(params, x_3d):
    # x_3d: PyTorch layout (N, C=3, T, H, W) -> channels-last, bf16 activations
    x = jnp.transpose(x_3d, (0, 2, 3, 4, 1)).astype(jnp.bfloat16)

    w, b = params["stem"]
    x = conv3d_folded(x, w, b, (1, 2, 2), (1, 3, 3), relu=True)

    for name, stride in (("layer1", 1), ("layer2", 2),
                         ("layer3", 2), ("layer4", 2)):
        blocks = params[name]
        x = basic_block(x, blocks[0], stride)
        x = basic_block(x, blocks[1], 1)

    N, T, H, W, C = x.shape
    feat = global_avgpool(x.reshape(N, T * H * W, C))        # == x.view(-1, 512), f32

    clip_feats_int, activity_output, activity_pred = fc_heads(feat, params)

    # unsqueeze(0).transpose(0,1)  ->  (N, 1, 512)
    return (clip_feats_int[:, None, :], activity_pred,
            activity_output[:, None, :])


# ---------------------------------------------------------------------------
if __name__ == "__main__":
    key = jax.random.PRNGKey(0)
    pkey, xkey = jax.random.split(key)

    params = init_params(pkey, num_classes=4)
    # small video clip: batch=2, 3 channels, 8 frames, 16x16 spatial
    x_3d = jax.random.normal(xkey, (2, 3, 8, 16, 16), jnp.float32)

    clip_feats_int, activity_pred, activity_output = forward(params, x_3d)
    jax.block_until_ready((clip_feats_int, activity_pred, activity_output))

    assert clip_feats_int.shape == (2, 1, 512)
    assert activity_pred.shape == (2, 4)
    assert activity_output.shape == (2, 1, 512)
    assert clip_feats_int.dtype == jnp.float32

    print("KERNEL_OK")
</pallas_src>

<mosaic_0001>
module attributes {stable_mosaic.version = 11 : i64} {
  func.func @_mm_kernel(%arg0: i32, %arg1: i32, %arg2: i32, %arg3: memref<256x512xbf16, #tpu.memory_space<vmem>>, %arg4: memref<512x64xbf16, #tpu.memory_space<vmem>>, %arg5: memref<1x64xf32, #tpu.memory_space<vmem>>, %arg6: memref<256x64xbf16, #tpu.memory_space<vmem>>, %arg7: memref<256x64xf32, #tpu.memory_space<vmem>>) attributes {dimension_semantics = [#tpu.dimension_semantics<parallel>, #tpu.dimension_semantics<parallel>, #tpu.dimension_semantics<arbitrary>], iteration_bounds = array<i64: 4, 1, 1>, scalar_prefetch = 0 : i64, scratch_operands = 1 : i64, tpu.core_type = #tpu.core_type<tc>, window_params = [{transform_indices = @transform_0, window_bounds = array<i64: 256, 512>}, {transform_indices = @transform_1, window_bounds = array<i64: 512, 64>}, {transform_indices = @transform_2, window_bounds = array<i64: 1, 64>}, {transform_indices = @transform_3, window_bounds = array<i64: 256, 64>}]} {
    %c0_i32 = arith.constant 0 : i32
    %0 = arith.cmpi eq, %arg2, %c0_i32 : i32
    %1 = arith.extui %0 : i1 to i32
    %c0_i32_0 = arith.constant 0 : i32
    %2 = arith.cmpi ne, %1, %c0_i32_0 : i32
    scf.if %2 {
      %cst_10 = arith.constant 0.000000e+00 : f32
      %12 = vector.broadcast %cst_10 : f32 to vector<256x64xf32>
      %c0_11 = arith.constant 0 : index
      %c0_12 = arith.constant 0 : index
      %13 = vector.load %arg7[%c0_11, %c0_12] : memref<256x64xf32, #tpu.memory_space<vmem>>, vector<256x64xf32>
      tpu.vector_store %arg7[%c0_11, %c0_12], %12 {strides = array<i32>} : memref<256x64xf32, #tpu.memory_space<vmem>>, vector<256x64xf32>,
    } else {
    }
    %c0 = arith.constant 0 : index
    %c0_1 = arith.constant 0 : index
    %3 = vector.load %arg7[%c0, %c0_1] : memref<256x64xf32, #tpu.memory_space<vmem>>, vector<256x64xf32>
    %c0_2 = arith.constant 0 : index
    %c0_3 = arith.constant 0 : index
    %4 = vector.load %arg3[%c0_2, %c0_3] : memref<256x512xbf16, #tpu.memory_space<vmem>>, vector<256x512xbf16>
    %c0_4 = arith.constant 0 : index
    %c0_5 = arith.constant 0 : index
    %5 = vector.load %arg4[%c0_4, %c0_5] : memref<512x64xbf16, #tpu.memory_space<vmem>>, vector<512x64xbf16>
    %cst = arith.constant dense<0.000000e+00> : vector<256x64xf32>
    %6 = tpu.matmul %4, %5, %cst {dimension_numbers = #tpu.dot_dimension_numbers<[1], [0], [0], [1], [0, 0, 1, 1], [], []>} : vector<256x512xbf16>, vector<512x64xbf16>, vector<256x64xf32> -> vector<256x64xf32>
    %7 = arith.addf %3, %6 : vector<256x64xf32>
    %c0_6 = arith.constant 0 : index
    %c0_7 = arith.constant 0 : index
    %8 = vector.load %arg7[%c0_6, %c0_7] : memref<256x64xf32, #tpu.memory_space<vmem>>, vector<256x64xf32>
    tpu.vector_store %arg7[%c0_6, %c0_7], %7 {strides = array<i32>} : memref<256x64xf32, #tpu.memory_space<vmem>>, vector<256x64xf32>,
    %c0_i32_8 = arith.constant 0 : i32
    %9 = arith.cmpi eq, %arg2, %c0_i32_8 : i32
    %10 = arith.extui %9 : i1 to i32
    %c0_i32_9 = arith.constant 0 : i32
    %11 = arith.cmpi ne, %10, %c0_i32_9 : i32
    scf.if %11 {
      %c0_10 = arith.constant 0 : index
      %c0_11 = arith.constant 0 : index
      %12 = vector.load %arg7[%c0_10, %c0_11] : memref<256x64xf32, #tpu.memory_space<vmem>>, vector<256x64xf32>
      %c0_12 = arith.constant 0 : index
      %c0_13 = arith.constant 0 : index
      %13 = vector.load %arg5[%c0_12, %c0_13] : memref<1x64xf32, #tpu.memory_space<vmem>>, vector<1x64xf32>
      %14 = vector.broadcast %13 : vector<1x64xf32> to vector<256x64xf32>
      %15 = arith.addf %12, %14 : vector<256x64xf32>
      %cst_14 = arith.constant 0.000000e+00 : f32
      %16 = vector.broadcast %cst_14 : f32 to vector<256x64xf32>
      %17 = arith.maximumf %15, %16 : vector<256x64xf32>
      %18 = arith.truncf %17 : vector<256x64xf32> to vector<256x64xbf16>
      %c0_15 = arith.constant 0 : index
      %c0_16 = arith.constant 0 : index
      %19 = vector.load %arg6[%c0_15, %c0_16] : memref<256x64xbf16, #tpu.memory_space<vmem>>, vector<256x64xbf16>
      tpu.vector_store %arg6[%c0_15, %c0_16], %18 {strides = array<i32>} : memref<256x64xbf16, #tpu.memory_space<vmem>>, vector<256x64xbf16>,
    } else {
    }
    return
  }
  func.func @transform_0(%arg0: i32, %arg1: i32, %arg2: i32) -> (i32, i32) {
    %c0_i32 = arith.constant 0 : i32
    return %arg0, %arg2 : i32, i32
  }
  func.func @transform_1(%arg0: i32, %arg1: i32, %arg2: i32) -> (i32, i32) {
    %c0_i32 = arith.constant 0 : i32
    return %arg2, %arg1 : i32, i32
  }
  func.func @transform_2(%arg0: i32, %arg1: i32, %arg2: i32) -> (i32, i32) {
    %c0_i32 = arith.constant 0 : i32
    %c0_i32_0 = arith.constant 0 : i32
    return %c0_i32, %arg1 : i32, i32
  }
  func.func @transform_3(%arg0: i32, %arg1: i32, %arg2: i32) -> (i32, i32) {
    %c0_i32 = arith.constant 0 : i32
    return %arg0, %arg1 : i32, i32
  }
}

</mosaic_0001>

<llo_original>
// kernel: tpu_custom_call.1
$region0: #{tpu_custom_call.1}
  #allocation0 [shape = 'u32[]', space=smem, size = 0x4, offset = 0x4, fixed_abs, tag = 'smem constant byte address 0x4 - core index']
  #allocation1 [shape = 'u32[144,128]{1,0:T(1,128)}', space=vmem, size = 0x12000, scoped, tag = 'internal scratch']
  #allocation2 [shape = 'f32[256,64]{1,0:T(8,128)}', space=vmem, size = 0x20000, scoped, tag = 'scratch operand']
  %s0 = inlined_call_operand.hbm [shape: bf16[1024,512], index: 0, kind: input, shape index: {}]
  %s1 = inlined_call_operand.vmem [shape: bf16[512,64], index: 1, kind: input, shape index: {}]
  %s2 = inlined_call_operand.vmem [shape: f32[1,64], index: 2, kind: input, shape index: {}]
  %s3 = inlined_call_operand.vmem [shape: bf16[1024,64], index: 3, kind: output, shape index: {}]
  %s4 = sld [smem:[#allocation0]]
  $region57: #{tpu_custom_call.1} parent=0
    _
  %s6 = ssub.s32 1, %s4
  %s7 = scalar_select 0, %s6, %s4
  $region1: #{tpu_custom_call.1} parent=0
    #allocation3 [shape = 'u8[524288]{0}', space=vmem, size = 0x80000, scoped, tag = 'input window, operand 0']
    #allocation4 [shape = 's32[2]{0}', space=sflag, size = 0x8, scoped, tag = 'scoped memory for tpu_custom_call.1']
    %8 = vsyncpa [#allocation4], 0
    %s9 = scalar_lea.sflag [#allocation4], 1
    %10 = vsyncpa %s9, 0
    loop: start=0, step=1, limit=6
    $region2: #{tpu_custom_call.1} parent=1 // loop_pre_header
      _
    $region3: #{tpu_custom_call.1} parent=1 // loop_header
      %s12 = sphi 0, %s16
      %p13 = scmp.ge.s32.totalorder %s12, 6
      %s19 = sphi 0, %s38
      %s20 = sphi 0, %s34
      %s21 = sphi 0, %s30
      %s22 = sphi 0, %s19
      %s23 = sphi 0, %s20
      %s24 = sphi 0, %s21
      %s25 = sphi 0, %s22
      %s26 = sphi 0, %s23
      %s27 = sphi 0, %s24
      %s43 = sphi 0, %s45
      %s46 = sphi 0, %s43
      %s47 = sphi 0, %s46
      %s63 = sphi 0, %s47
      %s71 = sphi 0, %s73
      %s74 = sphi 0, %s71
      %s75 = sphi 0, %s74
      %s91 = sphi 0, %s75
      %s97 = sphi 0, %s99
      %s100 = sphi 0, %s97
      %s101 = sphi 0, %s100
      %s117 = sphi 0, %s101
      %s125 = sphi 0, %s127
      %s128 = sphi 0, %s125
      %s129 = sphi 0, %s128
      %s145 = sphi 0, %s129
    $region4: #{tpu_custom_call.1} parent=1 // loop_header_branch
      %15 = sbr.rel (%p13) target = $region8
    $region5: #{tpu_custom_call.1} parent=1 // loop_body
      %s17 = ssub.s32 %s12, 1
      %s18 = ssub.s32 %s12, 2
      %s28 = sadd.s32 1, %s21
      %p29 = scmp.ge.s32.totalorder %s28, 1
      %s30 = scalar_select %p29, 0, %s28
      %s31 = sadd.s32 1, %s20
      %s32 = scalar_select %p29, %s31, %s20
      %p33 = scmp.ge.s32.totalorder %s32, 1
      %s34 = scalar_select %p33, 0, %s32
      %s35 = sadd.s32 1, %s19
      %s36 = scalar_select %p33, %s35, %s19
      %p37 = scmp.ge.s32.totalorder %s36, 4
      %s38 = scalar_select %p37, 0, %s36
      %s39 = ssub.s32 %s19, %s38
      %s40 = ssub.s32 %s21, %s30
      %s41 = sor.u32 %s39, %s40
      %p42 = scmp.eq.s32.totalorder %s41, 0
      %s44 = sadd.s32 %s43, 1
      %s45 = scalar_select %p42, %s43, %s44
      %p48 = pneg %p42
      %p49 = scmp.eq.s32.totalorder %s12, 3
      %p50 = por %p48, %p49
      %p51 = scmp.ne.s32.totalorder %s43, %s46
      %p52 = scmp.eq.s32.totalorder %s12, 0
      %p53 = por %p51, %p52
      %p54 = scmp.ne.s32.totalorder %s43, %s46
      %p55 = scmp.eq.s32.totalorder %s17, 3
      %p56 = por %p54, %p55
      %p57 = scmp.ne.s32.totalorder %s46, %s47
      %p58 = scmp.eq.s32.totalorder %s17, 0
      %p59 = por %p57, %p58
      %p60 = scmp.ne.s32.totalorder %s46, %s47
      %p61 = scmp.eq.s32.totalorder %s18, 3
      %p62 = por %p60, %p61
      %p64 = scmp.ne.s32.totalorder %s47, %s63
      %p65 = scmp.eq.s32.totalorder %s18, 0
      %p66 = por %p64, %p65
      %s67 = ssub.s32 %s21, %s30
      %s68 = ssub.s32 %s20, %s34
      %s69 = sor.u32 %s67, %s68
      %p70 = scmp.eq.s32.totalorder %s69, 0
      %s72 = sadd.s32 %s71, 1
      %s73 = scalar_select %p70, %s71, %s72
      %p76 = pneg %p70
      %p77 = scmp.eq.s32.totalorder %s12, 3
      %p78 = por %p76, %p77
      %p79 = scmp.ne.s32.totalorder %s71, %s74
      %p80 = scmp.eq.s32.totalorder %s12, 0
      %p81 = por %p79, %p80
      %p82 = scmp.ne.s32.totalorder %s71, %s74
      %p83 = scmp.eq.s32.totalorder %s17, 3
      %p84 = por %p82, %p83
      %p85 = scmp.ne.s32.totalorder %s74, %s75
      %p86 = scmp.eq.s32.totalorder %s17, 0
      %p87 = por %p85, %p86
      %p88 = scmp.ne.s32.totalorder %s74, %s75
      %p89 = scmp.eq.s32.totalorder %s18, 3
      %p90 = por %p88, %p89
      %p92 = scmp.ne.s32.totalorder %s75, %s91
      %p93 = scmp.eq.s32.totalorder %s18, 0
      %p94 = por %p92, %p93
      %s95 = ssub.s32 %s20, %s34
      %p96 = scmp.eq.s32.totalorder %s95, 0
      %s98 = sadd.s32 %s97, 1
      %s99 = scalar_select %p96, %s97, %s98
      %p102 = pneg %p96
      %p103 = scmp.eq.s32.totalorder %s12, 3
      %p104 = por %p102, %p103
      %p105 = scmp.ne.s32.totalorder %s97, %s100
      %p106 = scmp.eq.s32.totalorder %s12, 0
      %p107 = por %p105, %p106
      %p108 = scmp.ne.s32.totalorder %s97, %s100
      %p109 = scmp.eq.s32.totalorder %s17, 3
      %p110 = por %p108, %p109
      %p111 = scmp.ne.s32.totalorder %s100, %s101
      %p112 = scmp.eq.s32.totalorder %s17, 0
      %p113 = por %p111, %p112
      %p114 = scmp.ne.s32.totalorder %s100, %s101
      %p115 = scmp.eq.s32.totalorder %s18, 3
      %p116 = por %p114, %p115
      %p118 = scmp.ne.s32.totalorder %s101, %s117
      %p119 = scmp.eq.s32.totalorder %s18, 0
      %p120 = por %p118, %p119
      %s121 = ssub.s32 %s19, %s38
      %s122 = ssub.s32 %s20, %s34
      %s123 = sor.u32 %s121, %s122
      %p124 = scmp.eq.s32.totalorder %s123, 0
      %s126 = sadd.s32 %s125, 1
      %s127 = scalar_select %p124, %s125, %s126
      %p130 = pneg %p124
      %p131 = scmp.eq.s32.totalorder %s12, 3
      %p132 = por %p130, %p131
      %p133 = scmp.ne.s32.totalorder %s125, %s128
      %p134 = scmp.eq.s32.totalorder %s12, 0
      %p135 = por %p133, %p134
      %p136 = scmp.ne.s32.totalorder %s125, %s128
      %p137 = scmp.eq.s32.totalorder %s17, 3
      %p138 = por %p136, %p137
      %p139 = scmp.ne.s32.totalorder %s128, %s129
      %p140 = scmp.eq.s32.totalorder %s17, 0
      %p141 = por %p139, %p140
      %p142 = scmp.ne.s32.totalorder %s128, %s129
      %p143 = scmp.eq.s32.totalorder %s18, 3
      %p144 = por %p142, %p143
      %p146 = scmp.ne.s32.totalorder %s129, %s145
      %p147 = scmp.eq.s32.totalorder %s18, 0
      %p148 = por %p146, %p147
      %p149 = scmp.le.s32.totalorder 1, %s12
      %p150 = scmp.lt.s32.totalorder %s12, 5
      %p151 = pnand %p149, %p150
      %p152 = pneg %p151
      // Predicated region
      $region9: #{tpu_custom_call.1} parent=5 // pred_check
        _
      $region10: #{tpu_custom_call.1} parent=5 // pred_check_branch
        %154 = sbr.rel (%p151) target = $region12
      $region11: #{tpu_custom_call.1} parent=5 // pred_region
        %s155 = ssub.s32 %s12, 1
        // Predicated region
        $region13: #{tpu_custom_call.1} parent=11 // pred_check
          %p156 = pneg %p87
        $region14: #{tpu_custom_call.1} parent=11 // pred_check_branch
          %158 = sbr.rel (%p156) target = $region16
        $region15: #{tpu_custom_call.1} parent=11 // pred_region
          %s159 = smul.u32 64, %s24
          %p160 = scmp.lt.s32.totalorder %s159, 63
          %s161 = scalar_select %p160, %s159, 63
          %p162 = scmp.lt.s32.totalorder %s23, 0
          %s163 = scalar_select %p162, %s23, 0
          %s164 = sadd.s32 %s163, %s161
          %s165 = smul.addr %s164, 4
          %s166 = scalar_lea.vmem %s1, %s165
          %s167 = smul.u32 64, %s24
        $region16: #{tpu_custom_call.1} parent=11 // pred_fallthru
          _
        // Predicated region
        $region17: #{tpu_custom_call.1} parent=11 // pred_check
          %p168 = pneg %p113
        $region18: #{tpu_custom_call.1} parent=11 // pred_check_branch
          %170 = sbr.rel (%p168) target = $region20
        $region19: #{tpu_custom_call.1} parent=11 // pred_region
          %p171 = scmp.lt.s32.totalorder %s23, 0
          %s172 = scalar_select %p171, %s23, 0
          %s173 = scalar_lea.vmem %s2, %s172
        $region20: #{tpu_custom_call.1} parent=11 // pred_fallthru
          _
      $region12: #{tpu_custom_call.1} parent=5 // pred_fallthru
        _
      %p174 = scmp.lt.s32.totalorder %s12, 4
      // Predicated region
      $region21: #{tpu_custom_call.1} parent=5 // pred_check
        %p175 = pneg %p174
      $region22: #{tpu_custom_call.1} parent=5 // pred_check_branch
        %177 = sbr.rel (%p175) target = $region24
      $region23: #{tpu_custom_call.1} parent=5 // pred_region
        // Predicated region
        $region25: #{tpu_custom_call.1} parent=23 // pred_check
          %p178 = pneg %p53
        $region26: #{tpu_custom_call.1} parent=23 // pred_check_branch
          %180 = sbr.rel (%p178) target = $region28
        $region27: #{tpu_custom_call.1} parent=23 // pred_region
          %s181 = sand.u32 %s43, 1
          %s182 = scalar_lea.sflag [#allocation4], %s181
          %s183 = sand.u32 %s43, 1
          %s184 = smul.addr %s183, 512
          %s185 = scalar_lea.vmem [#allocation3], %s184
          %s186 = smul.u32 32, %s19
          %s187 = smul.u32 4, %s21
          %s189 = ssub.s32 8192, 8192
          %190 = vsyncadd %s182, %s189
          %s191 = smul.addr %s186, 4
          %s192 = sadd.s32 %s187, %s191
          %s193 = smul.addr %s192, 64
          %s194 = scalar_lea.hbm %s0, %s193
          %s195 = sshll.u32 %s185, 4
          %s196 = int_to_ptr.vmem [resolvable:$true] %s195
          %201 = dma.hbm_to_vmem [thread:$0]  %s194, 8192, %s196, %s182, 256, 256, 16
        $region28: #{tpu_custom_call.1} parent=23 // pred_fallthru
          _
      $region24: #{tpu_custom_call.1} parent=5 // pred_fallthru
        _
      %p202 = scmp.le.s32.totalorder 1, %s12
      %p203 = scmp.lt.s32.totalorder %s12, 5
      %p204 = pnand %p202, %p203
      %p205 = pneg %p204
      // Predicated region
      $region29: #{tpu_custom_call.1} parent=5 // pred_check
        _
      $region30: #{tpu_custom_call.1} parent=5 // pred_check_branch
        %207 = sbr.rel (%p204) target = $region32
      $region31: #{tpu_custom_call.1} parent=5 // pred_region
        %s208 = ssub.s32 %s12, 1
        %s209 = sand.u32 %s46, 1
        %s210 = scalar_lea.sflag [#allocation4], %s209
        %s211 = sand.u32 %s46, 1
        %s212 = smul.addr %s211, 512
        %s213 = scalar_lea.vmem [#allocation3], %s212
        // Predicated region
        $region33: #{tpu_custom_call.1} parent=31 // pred_check
          %p214 = pneg %p59
        $region34: #{tpu_custom_call.1} parent=31 // pred_check_branch
          %216 = sbr.rel (%p214) target = $region36
        $region35: #{tpu_custom_call.1} parent=31 // pred_region
          %217 = dma.done %s210, 8192
        $region36: #{tpu_custom_call.1} parent=31 // pred_fallthru
          _
        %s218 = sand.u32 %s46, 1
        %s219 = scalar_lea.sflag [#allocation4], %s218
        %s220 = sand.u32 %s46, 1
        %s221 = smul.addr %s220, 512
        %s222 = scalar_lea.vmem [#allocation3], %s221
        %p223 = pneg %p59
        %p224 = pneg %p56
        %s225 = smul.u32 64, %s24
        %p226 = scmp.lt.s32.totalorder %s225, 63
        %s227 = scalar_select %p226, %s225, 63
        %p228 = scmp.lt.s32.totalorder %s23, 0
        %s229 = scalar_select %p228, %s23, 0
        %s230 = sadd.s32 %s229, %s227
        %s231 = smul.addr %s230, 4
        %s232 = scalar_lea.vmem %s1, %s231
        %p233 = pneg %p87
        %p234 = pneg %p84
        %p235 = scmp.lt.s32.totalorder %s23, 0
        %s236 = scalar_select %p235, %s23, 0
        %s237 = scalar_lea.vmem %s2, %s236
        %p238 = pneg %p113
        %p239 = pneg %p110
        %p240 = pneg %p141
        %p241 = pneg %p138
        %s242 = smul.u32 32, %s22
        %p243 = scmp.lt.s32.totalorder %s242, 127
        %s244 = scalar_select %p243, %s242, 127
        %p245 = scmp.lt.s32.totalorder %s23, 0
        %s246 = scalar_select %p245, %s23, 0
        %s247 = sadd.s32 %s246, %s244
        %s248 = smul.addr %s247, 4
        %s249 = scalar_lea.vmem %s3, %s248
        %s250 = smul.u32 32, %s22
        %s251 = smul.u32 4, %s24
        %s252 = smul.u32 64, %s24
        %p253 = scmp.lt.s32.totalorder %s252, 63
        %s254 = scalar_select %p253, %s252, 63
        %p255 = scmp.lt.s32.totalorder %s23, 0
        %s256 = scalar_select %p255, %s23, 0
        %s257 = sadd.s32 %s256, %s254
        %s258 = smul.addr %s257, 4
        %s259 = scalar_lea.vmem %s1, %s258
        %s260 = smul.u32 64, %s24
        %p261 = scmp.lt.s32.totalorder %s23, 0
        %s262 = scalar_select %p261, %s23, 0
        %s263 = scalar_lea.vmem %s2, %s262
        %s264 = smul.u32 32, %s22
        %p265 = scmp.lt.s32.totalorder %s264, 127
        %s266 = scalar_select %p265, %s264, 127
        %p267 = scmp.lt.s32.totalorder %s23, 0
        %s268 = scalar_select %p267, %s23, 0
        %s269 = sadd.s32 %s268, %s266
        %s270 = smul.addr %s269, 4
        %s271 = scalar_lea.vmem %s3, %s270
        %s272 = smul.u32 32, %s22
        %p274 = scmp.eq.s32.totalorder %s24, 0
        // Predicated region
        $region37: #{tpu_custom_call.1} parent=31 // pred_check
          %p275 = pneg %p274
        $region38: #{tpu_custom_call.1} parent=31 // pred_check_branch
          %277 = sbr.rel (%p275) target = $region40
        $region39: #{tpu_custom_call.1} parent=31 // pred_region
          %vm278 = vcmask 523264
          %279 = vst.msk [vmem:[#allocation2] sm:$0xff] %vm278, 0.0
          %280 = vst.msk [vmem:[#allocation2 + $0x8] sm:$0xff] %vm278, 0.0
          %281 = vst.msk [vmem:[#allocation2 + $0x10] sm:$0xff] %vm278, 0.0
          %282 = vst.msk [vmem:[#allocation2 + $0x18] sm:$0xff] %vm278, 0.0
          %283 = vst.msk [vmem:[#allocation2 + $0x20] sm:$0xff] %vm278, 0.0
          %284 = vst.msk [vmem:[#allocation2 + $0x28] sm:$0xff] %vm278, 0.0
          %285 = vst.msk [vmem:[#allocation2 + $0x30] sm:$0xff] %vm278, 0.0
          %286 = vst.msk [vmem:[#allocation2 + $0x38] sm:$0xff] %vm278, 0.0
          %287 = vst.msk [vmem:[#allocation2 + $0x40] sm:$0xff] %vm278, 0.0
          %288 = vst.msk [vmem:[#allocation2 + $0x48] sm:$0xff] %vm278, 0.0
          %289 = vst.msk [vmem:[#allocation2 + $0x50] sm:$0xff] %vm278, 0.0
          %290 = vst.msk [vmem:[#allocation2 + $0x58] sm:$0xff] %vm278, 0.0
          %291 = vst.msk [vmem:[#allocation2 + $0x60] sm:$0xff] %vm278, 0.0
          %292 = vst.msk [vmem:[#allocation2 + $0x68] sm:$0xff] %vm278, 0.0
          %293 = vst.msk [vmem:[#allocation2 + $0x70] sm:$0xff] %vm278, 0.0
          %294 = vst.msk [vmem:[#allocation2 + $0x78] sm:$0xff] %vm278, 0.0
          %295 = vst.msk [vmem:[#allocation2 + $0x80] sm:$0xff] %vm278, 0.0
          %296 = vst.msk [vmem:[#allocation2 + $0x88] sm:$0xff] %vm278, 0.0
          %297 = vst.msk [vmem:[#allocation2 + $0x90] sm:$0xff] %vm278, 0.0
          %298 = vst.msk [vmem:[#allocation2 + $0x98] sm:$0xff] %vm278, 0.0
          %299 = vst.msk [vmem:[#allocation2 + $0xa0] sm:$0xff] %vm278, 0.0
          %300 = vst.msk [vmem:[#allocation2 + $0xa8] sm:$0xff] %vm278, 0.0
          %301 = vst.msk [vmem:[#allocation2 + $0xb0] sm:$0xff] %vm278, 0.0
          %302 = vst.msk [vmem:[#allocation2 + $0xb8] sm:$0xff] %vm278, 0.0
          %303 = vst.msk [vmem:[#allocation2 + $0xc0] sm:$0xff] %vm278, 0.0
          %304 = vst.msk [vmem:[#allocation2 + $0xc8] sm:$0xff] %vm278, 0.0
          %305 = vst.msk [vmem:[#allocation2 + $0xd0] sm:$0xff] %vm278, 0.0
          %306 = vst.msk [vmem:[#allocation2 + $0xd8] sm:$0xff] %vm278, 0.0
          %307 = vst.msk [vmem:[#allocation2 + $0xe0] sm:$0xff] %vm278, 0.0
          %308 = vst.msk [vmem:[#allocation2 + $0xe8] sm:$0xff] %vm278, 0.0
          %309 = vst.msk [vmem:[#allocation2 + $0xf0] sm:$0xff] %vm278, 0.0
          %310 = vst.msk [vmem:[#allocation2 + $0xf8] sm:$0xff] %vm278, 0.0
        $region40: #{tpu_custom_call.1} parent=31 // pred_fallthru
          _
        %v311 = vld [vmem:[#allocation2] sm:$0xff]
        %v312 = vld [vmem:[#allocation2 + $0x8] sm:$0xff]
        %v313 = vld [vmem:[#allocation2 + $0x10] sm:$0xff]
        %v314 = vld [vmem:[#allocation2 + $0x18] sm:$0xff]
        %v315 = vld [vmem:[#allocation2 + $0x20] sm:$0xff]
        %v316 = vld [vmem:[#allocation2 + $0x28] sm:$0xff]
        %v317 = vld [vmem:[#allocation2 + $0x30] sm:$0xff]
        %v318 = vld [vmem:[#allocation2 + $0x38] sm:$0xff]
        %v319 = vld [vmem:[#allocation2 + $0x40] sm:$0xff]
        %v320 = vld [vmem:[#allocation2 + $0x48] sm:$0xff]
        %v321 = vld [vmem:[#allocation2 + $0x50] sm:$0xff]
        %v322 = vld [vmem:[#allocation2 + $0x58] sm:$0xff]
        %v323 = vld [vmem:[#allocation2 + $0x60] sm:$0xff]
        %v324 = vld [vmem:[#allocation2 + $0x68] sm:$0xff]
        %v325 = vld [vmem:[#allocation2 + $0x70] sm:$0xff]
        %v326 = vld [vmem:[#allocation2 + $0x78] sm:$0xff]
        %v327 = vld [vmem:[#allocation2 + $0x80] sm:$0xff]
        %v328 = vld [vmem:[#allocation2 + $0x88] sm:$0xff]
        %v329 = vld [vmem:[#allocation2 + $0x90] sm:$0xff]
        %v330 = vld [vmem:[#allocation2 + $0x98] sm:$0xff]
        %v331 = vld [vmem:[#allocation2 + $0xa0] sm:$0xff]
        %v332 = vld [vmem:[#allocation2 + $0xa8] sm:$0xff]
        %v333 = vld [vmem:[#allocation2 + $0xb0] sm:$0xff]
        %v334 = vld [vmem:[#allocation2 + $0xb8] sm:$0xff]
        %v335 = vld [vmem:[#allocation2 + $0xc0] sm:$0xff]
        %v336 = vld [vmem:[#allocation2 + $0xc8] sm:$0xff]
        %v337 = vld [vmem:[#allocation2 + $0xd0] sm:$0xff]
        %v338 = vld [vmem:[#allocation2 + $0xd8] sm:$0xff]
        %v339 = vld [vmem:[#allocation2 + $0xe0] sm:$0xff]
        %v340 = vld [vmem:[#allocation2 + $0xe8] sm:$0xff]
        %v341 = vld [vmem:[#allocation2 + $0xf0] sm:$0xff]
        %v342 = vld [vmem:[#allocation2 + $0xf8] sm:$0xff]
        %v343 = vld [vmem:[%s213] sm:$0xff]
        %v344 = vld [vmem:[%s213 + $0x8] sm:$0xff]
        %v345 = vld [vmem:[%s213 + $0x10] sm:$0xff]
        %v346 = vld [vmem:[%s213 + $0x18] sm:$0xff]
        %v347 = vld [vmem:[%s213 + $0x20] sm:$0xff]
        %v348 = vld [vmem:[%s213 + $0x28] sm:$0xff]
        %v349 = vld [vmem:[%s213 + $0x30] sm:$0xff]
        %v350 = vld [vmem:[%s213 + $0x38] sm:$0xff]
        %v351 = vld [vmem:[%s213 + $0x40] sm:$0xff]
        %v352 = vld [vmem:[%s213 + $0x48] sm:$0xff]
        %v353 = vld [vmem:[%s213 + $0x50] sm:$0xff]
        %v354 = vld [vmem:[%s213 + $0x58] sm:$0xff]
        %v355 = vld [vmem:[%s213 + $0x60] sm:$0xff]
        %v356 = vld [vmem:[%s213 + $0x68] sm:$0xff]
        %v357 = vld [vmem:[%s213 + $0x70] sm:$0xff]
        %v358 = vld [vmem:[%s213 + $0x78] sm:$0xff]
        %v359 = vld [vmem:[%s213 + $0x80] sm:$0xff]
        %v360 = vld [vmem:[%s213 + $0x88] sm:$0xff]
        %v361 = vld [vmem:[%s213 + $0x90] sm:$0xff]
        %v362 = vld [vmem:[%s213 + $0x98] sm:$0xff]
        %v363 = vld [vmem:[%s213 + $0xa0] sm:$0xff]
        %v364 = vld [vmem:[%s213 + $0xa8] sm:$0xff]
        %v365 = vld [vmem:[%s213 + $0xb0] sm:$0xff]
        %v366 = vld [vmem:[%s213 + $0xb8] sm:$0xff]
        %v367 = vld [vmem:[%s213 + $0xc0] sm:$0xff]
        %v368 = vld [vmem:[%s213 + $0xc8] sm:$0xff]
        %v369 = vld [vmem:[%s213 + $0xd0] sm:$0xff]
        %v370 = vld [vmem:[%s213 + $0xd8] sm:$0xff]
        %v371 = vld [vmem:[%s213 + $0xe0] sm:$0xff]
        %v372 = vld [vmem:[%s213 + $0xe8] sm:$0xff]
        %v373 = vld [vmem:[%s213 + $0xf0] sm:$0xff]
        %v374 = vld [vmem:[%s213 + $0xf8] sm:$0xff]
        %v375 = vld [vmem:[%s213 + $0x100] sm:$0xff]
        %v376 = vld [vmem:[%s213 + $0x108] sm:$0xff]
        %v377 = vld [vmem:[%s213 + $0x110] sm:$0xff]
        %v378 = vld [vmem:[%s213 + $0x118] sm:$0xff]
        %v379 = vld [vmem:[%s213 + $0x120] sm:$0xff]
        %v380 = vld [vmem:[%s213 + $0x128] sm:$0xff]
        %v381 = vld [vmem:[%s213 + $0x130] sm:$0xff]
        %v382 = vld [vmem:[%s213 + $0x138] sm:$0xff]
        %v383 = vld [vmem:[%s213 + $0x140] sm:$0xff]
        %v384 = vld [vmem:[%s213 + $0x148] sm:$0xff]
        %v385 = vld [vmem:[%s213 + $0x150] sm:$0xff]
        %v386 = vld [vmem:[%s213 + $0x158] sm:$0xff]
        %v387 = vld [vmem:[%s213 + $0x160] sm:$0xff]
        %v388 = vld [vmem:[%s213 + $0x168] sm:$0xff]
        %v389 = vld [vmem:[%s213 + $0x170] sm:$0xff]
        %v390 = vld [vmem:[%s213 + $0x178] sm:$0xff]
        %v391 = vld [vmem:[%s213 + $0x180] sm:$0xff]
        %v392 = vld [vmem:[%s213 + $0x188] sm:$0xff]
        %v393 = vld [vmem:[%s213 + $0x190] sm:$0xff]
        %v394 = vld [vmem:[%s213 + $0x198] sm:$0xff]
        %v395 = vld [vmem:[%s213 + $0x1a0] sm:$0xff]
        %v396 = vld [vmem:[%s213 + $0x1a8] sm:$0xff]
        %v397 = vld [vmem:[%s213 + $0x1b0] sm:$0xff]
        %v398 = vld [vmem:[%s213 + $0x1b8] sm:$0xff]
        %v399 = vld [vmem:[%s213 + $0x1c0] sm:$0xff]
        %v400 = vld [vmem:[%s213 + $0x1c8] sm:$0xff]
        %v401 = vld [vmem:[%s213 + $0x1d0] sm:$0xff]
        %v402 = vld [vmem:[%s213 + $0x1d8] sm:$0xff]
        %v403 = vld [vmem:[%s213 + $0x1e0] sm:$0xff]
        %v404 = vld [vmem:[%s213 + $0x1e8] sm:$0xff]
        %v405 = vld [vmem:[%s213 + $0x1f0] sm:$0xff]
        %v406 = vld [vmem:[%s213 + $0x1f8] sm:$0xff]
        %v407 = vld [vmem:[%s259] sm:$0xf]
        %v408 = vld [vmem:[%s259 + $0x4] sm:$0xf]
        %v409 = vld [vmem:[%s259 + $0x8] sm:$0xf]
        %v410 = vld [vmem:[%s259 + $0xc] sm:$0xf]
        %v411 = vld [vmem:[%s259 + $0x10] sm:$0xf]
        %v412 = vld [vmem:[%s259 + $0x14] sm:$0xf]
        %v413 = vld [vmem:[%s259 + $0x18] sm:$0xf]
        %v414 = vld [vmem:[%s259 + $0x1c] sm:$0xf]
        %v415 = vld [vmem:[%s259 + $0x20] sm:$0xf]
        %v416 = vld [vmem:[%s259 + $0x24] sm:$0xf]
        %v417 = vld [vmem:[%s259 + $0x28] sm:$0xf]
        %v418 = vld [vmem:[%s259 + $0x2c] sm:$0xf]
        %v419 = vld [vmem:[%s259 + $0x30] sm:$0xf]
        %v420 = vld [vmem:[%s259 + $0x34] sm:$0xf]
        %v421 = vld [vmem:[%s259 + $0x38] sm:$0xf]
        %v422 = vld [vmem:[%s259 + $0x3c] sm:$0xf]
        %v423 = vld [vmem:[%s259 + $0x40] sm:$0xf]
        %v424 = vld [vmem:[%s259 + $0x44] sm:$0xf]
        %v425 = vld [vmem:[%s259 + $0x48] sm:$0xf]
        %v426 = vld [vmem:[%s259 + $0x4c] sm:$0xf]
        %v427 = vld [vmem:[%s259 + $0x50] sm:$0xf]
        %v428 = vld [vmem:[%s259 + $0x54] sm:$0xf]
        %v429 = vld [vmem:[%s259 + $0x58] sm:$0xf]
        %v430 = vld [vmem:[%s259 + $0x5c] sm:$0xf]
        %v431 = vld [vmem:[%s259 + $0x60] sm:$0xf]
        %v432 = vld [vmem:[%s259 + $0x64] sm:$0xf]
        %v433 = vld [vmem:[%s259 + $0x68] sm:$0xf]
        %v434 = vld [vmem:[%s259 + $0x6c] sm:$0xf]
        %v435 = vld [vmem:[%s259 + $0x70] sm:$0xf]
        %v436 = vld [vmem:[%s259 + $0x74] sm:$0xf]
        %v437 = vld [vmem:[%s259 + $0x78] sm:$0xf]
        %v438 = vld [vmem:[%s259 + $0x7c] sm:$0xf]
        %v439 = vld [vmem:[%s259 + $0x80] sm:$0xf]
        %v440 = vld [vmem:[%s259 + $0x84] sm:$0xf]
        %v441 = vld [vmem:[%s259 + $0x88] sm:$0xf]
        %v442 = vld [vmem:[%s259 + $0x8c] sm:$0xf]
        %v443 = vld [vmem:[%s259 + $0x90] sm:$0xf]
        %v444 = vld [vmem:[%s259 + $0x94] sm:$0xf]
        %v445 = vld [vmem:[%s259 + $0x98] sm:$0xf]
        %v446 = vld [vmem:[%s259 + $0x9c] sm:$0xf]
        %v447 = vld [vmem:[%s259 + $0xa0] sm:$0xf]
        %v448 = vld [vmem:[%s259 + $0xa4] sm:$0xf]
        %v449 = vld [vmem:[%s259 + $0xa8] sm:$0xf]
        %v450 = vld [vmem:[%s259 + $0xac] sm:$0xf]
        %v451 = vld [vmem:[%s259 + $0xb0] sm:$0xf]
        %v452 = vld [vmem:[%s259 + $0xb4] sm:$0xf]
        %v453 = vld [vmem:[%s259 + $0xb8] sm:$0xf]
        %v454 = vld [vmem:[%s259 + $0xbc] sm:$0xf]
        %v455 = vld [vmem:[%s259 + $0xc0] sm:$0xf]
        %v456 = vld [vmem:[%s259 + $0xc4] sm:$0xf]
        %v457 = vld [vmem:[%s259 + $0xc8] sm:$0xf]
        %v458 = vld [vmem:[%s259 + $0xcc] sm:$0xf]
        %v459 = vld [vmem:[%s259 + $0xd0] sm:$0xf]
        %v460 = vld [vmem:[%s259 + $0xd4] sm:$0xf]
        %v461 = vld [vmem:[%s259 + $0xd8] sm:$0xf]
        %v462 = vld [vmem:[%s259 + $0xdc] sm:$0xf]
        %v463 = vld [vmem:[%s259 + $0xe0] sm:$0xf]
        %v464 = vld [vmem:[%s259 + $0xe4] sm:$0xf]
        %v465 = vld [vmem:[%s259 + $0xe8] sm:$0xf]
        %v466 = vld [vmem:[%s259 + $0xec] sm:$0xf]
        %v467 = vld [vmem:[%s259 + $0xf0] sm:$0xf]
        %v468 = vld [vmem:[%s259 + $0xf4] sm:$0xf]
        %v469 = vld [vmem:[%s259 + $0xf8] sm:$0xf]
        %v470 = vld [vmem:[%s259 + $0xfc] sm:$0xf]
        %v535 = vunpack.c.l.b16 %v343
        %v536 = vunpack.c.h.b16 %v343
        %v537 = vunpack.c.l.b16 %v344
        %v538 = vunpack.c.h.b16 %v344
        %v539 = vunpack.c.l.b16 %v345
        %v540 = vunpack.c.h.b16 %v345
        %v541 = vunpack.c.l.b16 %v346
        %v542 = vunpack.c.h.b16 %v346
        %v543 = vunpack.c.l.b16 %v347
        %v544 = vunpack.c.h.b16 %v347
        %v545 = vunpack.c.l.b16 %v348
        %v546 = vunpack.c.h.b16 %v348
        %v547 = vunpack.c.l.b16 %v349
        %v548 = vunpack.c.h.b16 %v349
        %v549 = vunpack.c.l.b16 %v350
        %v550 = vunpack.c.h.b16 %v350
        %v551 = vunpack.c.l.b16 %v351
        %v552 = vunpack.c.h.b16 %v351
        %v553 = vunpack.c.l.b16 %v352
        %v554 = vunpack.c.h.b16 %v352
        %v555 = vunpack.c.l.b16 %v353
        %v556 = vunpack.c.h.b16 %v353
        %v557 = vunpack.c.l.b16 %v354
        %v558 = vunpack.c.h.b16 %v354
        %v559 = vunpack.c.l.b16 %v355
        %v560 = vunpack.c.h.b16 %v355
        %v561 = vunpack.c.l.b16 %v356
        %v562 = vunpack.c.h.b16 %v356
        %v563 = vunpack.c.l.b16 %v357
        %v564 = vunpack.c.h.b16 %v357
        %v565 = vunpack.c.l.b16 %v358
        %v566 = vunpack.c.h.b16 %v358
        %v567 = vunpack.c.l.b16 %v359
        %v568 = vunpack.c.h.b16 %v359
        %v569 = vunpack.c.l.b16 %v360
        %v570 = vunpack.c.h.b16 %v360
        %v571 = vunpack.c.l.b16 %v361
        %v572 = vunpack.c.h.b16 %v361
        %v573 = vunpack.c.l.b16 %v362
        %v574 = vunpack.c.h.b16 %v362
        %v575 = vunpack.c.l.b16 %v363
        %v576 = vunpack.c.h.b16 %v363
        %v577 = vunpack.c.l.b16 %v364
        %v578 = vunpack.c.h.b16 %v364
        %v579 = vunpack.c.l.b16 %v365
        %v580 = vunpack.c.h.b16 %v365
        %v581 = vunpack.c.l.b16 %v366
        %v582 = vunpack.c.h.b16 %v366
        %v583 = vunpack.c.l.b16 %v367
        %v584 = vunpack.c.h.b16 %v367
        %v585 = vunpack.c.l.b16 %v368
        %v586 = vunpack.c.h.b16 %v368
        %v587 = vunpack.c.l.b16 %v369
        %v588 = vunpack.c.h.b16 %v369
        %v589 = vunpack.c.l.b16 %v370
        %v590 = vunpack.c.h.b16 %v370
        %v591 = vunpack.c.l.b16 %v371
        %v592 = vunpack.c.h.b16 %v371
        %v593 = vunpack.c.l.b16 %v372
        %v594 = vunpack.c.h.b16 %v372
        %v595 = vunpack.c.l.b16 %v373
        %v596 = vunpack.c.h.b16 %v373
        %v597 = vunpack.c.l.b16 %v374
        %v598 = vunpack.c.h.b16 %v374
        %v599 = vunpack.c.l.b16 %v375
        %v600 = vunpack.c.h.b16 %v375
        %v601 = vunpack.c.l.b16 %v376
        %v602 = vunpack.c.h.b16 %v376
        %v603 = vunpack.c.l.b16 %v377
        %v604 = vunpack.c.h.b16 %v377
        %v605 = vunpack.c.l.b16 %v378
        %v606 = vunpack.c.h.b16 %v378
        %v607 = vunpack.c.l.b16 %v379
        %v608 = vunpack.c.h.b16 %v379
        %v609 = vunpack.c.l.b16 %v380
        %v610 = vunpack.c.h.b16 %v380
        %v611 = vunpack.c.l.b16 %v381
        %v612 = vunpack.c.h.b16 %v381
        %v613 = vunpack.c.l.b16 %v382
        %v614 = vunpack.c.h.b16 %v382
        %v615 = vunpack.c.l.b16 %v383
        %v616 = vunpack.c.h.b16 %v383
        %v617 = vunpack.c.l.b16 %v384
        %v618 = vunpack.c.h.b16 %v384
        %v619 = vunpack.c.l.b16 %v385
        %v620 = vunpack.c.h.b16 %v385
        %v621 = vunpack.c.l.b16 %v386
        %v622 = vunpack.c.h.b16 %v386
        %v623 = vunpack.c.l.b16 %v387
        %v624 = vunpack.c.h.b16 %v387
        %v625 = vunpack.c.l.b16 %v388
        %v626 = vunpack.c.h.b16 %v388
        %v627 = vunpack.c.l.b16 %v389
        %v628 = vunpack.c.h.b16 %v389
        %v629 = vunpack.c.l.b16 %v390
        %v630 = vunpack.c.h.b16 %v390
        %v631 = vunpack.c.l.b16 %v391
        %v632 = vunpack.c.h.b16 %v391
        %v633 = vunpack.c.l.b16 %v392
        %v634 = vunpack.c.h.b16 %v392
        %v635 = vunpack.c.l.b16 %v393
        %v636 = vunpack.c.h.b16 %v393
        %v637 = vunpack.c.l.b16 %v394
        %v638 = vunpack.c.h.b16 %v394
        %v639 = vunpack.c.l.b16 %v395
        %v640 = vunpack.c.h.b16 %v395
        %v641 = vunpack.c.l.b16 %v396
        %v642 = vunpack.c.h.b16 %v396
        %v643 = vunpack.c.l.b16 %v397
        %v644 = vunpack.c.h.b16 %v397
        %v645 = vunpack.c.l.b16 %v398
        %v646 = vunpack.c.h.b16 %v398
        %v647 = vunpack.c.l.b16 %v399
        %v648 = vunpack.c.h.b16 %v399
        %v649 = vunpack.c.l.b16 %v400
        %v650 = vunpack.c.h.b16 %v400
        %v651 = vunpack.c.l.b16 %v401
        %v652 = vunpack.c.h.b16 %v401
        %v653 = vunpack.c.l.b16 %v402
        %v654 = vunpack.c.h.b16 %v402
        %v655 = vunpack.c.l.b16 %v403
        %v656 = vunpack.c.h.b16 %v403
        %v657 = vunpack.c.l.b16 %v404
        %v658 = vunpack.c.h.b16 %v404
        %v659 = vunpack.c.l.b16 %v405
        %v660 = vunpack.c.h.b16 %v405
        %v661 = vunpack.c.l.b16 %v406
        %v662 = vunpack.c.h.b16 %v406
        %v663 = vpack.c.b16 %v539, %v535
        %v664 = vpack.c.b16 %v540, %v536
        %v665 = vpack.c.b16 %v541, %v537
        %v666 = vpack.c.b16 %v542, %v538
        %v667 = vpack.c.b16 %v547, %v543
        %v668 = vpack.c.b16 %v548, %v544
        %v669 = vpack.c.b16 %v549, %v545
        %v670 = vpack.c.b16 %v550, %v546
        %v671 = vpack.c.b16 %v555, %v551
        %v672 = vpack.c.b16 %v556, %v552
        %v673 = vpack.c.b16 %v557, %v553
        %v674 = vpack.c.b16 %v558, %v554
        %v675 = vpack.c.b16 %v563, %v559
        %v676 = vpack.c.b16 %v564, %v560
        %v677 = vpack.c.b16 %v565, %v561
        %v678 = vpack.c.b16 %v566, %v562
        %v679 = vpack.c.b16 %v571, %v567
        %v680 = vpack.c.b16 %v572, %v568
        %v681 = vpack.c.b16 %v573, %v569
        %v682 = vpack.c.b16 %v574, %v570
        %v683 = vpack.c.b16 %v579, %v575
        %v684 = vpack.c.b16 %v580, %v576
        %v685 = vpack.c.b16 %v581, %v577
        %v686 = vpack.c.b16 %v582, %v578
        %v687 = vpack.c.b16 %v587, %v583
        %v688 = vpack.c.b16 %v588, %v584
        %v689 = vpack.c.b16 %v589, %v585
        %v690 = vpack.c.b16 %v590, %v586
        %v691 = vpack.c.b16 %v595, %v591
        %v692 = vpack.c.b16 %v596, %v592
        %v693 = vpack.c.b16 %v597, %v593
        %v694 = vpack.c.b16 %v598, %v594
        %v695 = vpack.c.b16 %v603, %v599
        %v696 = vpack.c.b16 %v604, %v600
        %v697 = vpack.c.b16 %v605, %v601
        %v698 = vpack.c.b16 %v606, %v602
        %v699 = vpack.c.b16 %v611, %v607
        %v700 = vpack.c.b16 %v612, %v608
        %v701 = vpack.c.b16 %v613, %v609
        %v702 = vpack.c.b16 %v614, %v610
        %v703 = vpack.c.b16 %v619, %v615
        %v704 = vpack.c.b16 %v620, %v616
        %v705 = vpack.c.b16 %v621, %v617
        %v706 = vpack.c.b16 %v622, %v618
        %v707 = vpack.c.b16 %v627, %v623
        %v708 = vpack.c.b16 %v628, %v624
        %v709 = vpack.c.b16 %v629, %v625
        %v710 = vpack.c.b16 %v630, %v626
        %v711 = vpack.c.b16 %v635, %v631
        %v712 = vpack.c.b16 %v636, %v632
        %v713 = vpack.c.b16 %v637, %v633
        %v714 = vpack.c.b16 %v638, %v634
        %v715 = vpack.c.b16 %v643, %v639
        %v716 = vpack.c.b16 %v644, %v640
        %v717 = vpack.c.b16 %v645, %v641
        %v718 = vpack.c.b16 %v646, %v642
        %v719 = vpack.c.b16 %v651, %v647
        %v720 = vpack.c.b16 %v652, %v648
        %v721 = vpack.c.b16 %v653, %v649
        %v722 = vpack.c.b16 %v654, %v650
        %v723 = vpack.c.b16 %v659, %v655
        %v724 = vpack.c.b16 %v660, %v656
        %v725 = vpack.c.b16 %v661, %v657
        %v726 = vpack.c.b16 %v662, %v658
        %v855 = vunpack.c.l.b16 %v407
        %v856 = vunpack.c.l.b16 %v408
        %v857 = vunpack.c.l.b16 %v409
        %v858 = vunpack.c.l.b16 %v410
        %v859 = vunpack.c.l.b16 %v411
        %v860 = vunpack.c.l.b16 %v412
        %v861 = vunpack.c.l.b16 %v413
        %v862 = vunpack.c.l.b16 %v414
        %v863 = vunpack.c.l.b16 %v415
        %v864 = vunpack.c.l.b16 %v416
        %v865 = vunpack.c.l.b16 %v417
        %v866 = vunpack.c.l.b16 %v418
        %v867 = vunpack.c.l.b16 %v419
        %v868 = vunpack.c.l.b16 %v420
        %v869 = vunpack.c.l.b16 %v421
        %v870 = vunpack.c.l.b16 %v422
        %v871 = vunpack.c.l.b16 %v423
        %v872 = vunpack.c.l.b16 %v424
        %v873 = vunpack.c.l.b16 %v425
        %v874 = vunpack.c.l.b16 %v426
        %v875 = vunpack.c.l.b16 %v427
        %v876 = vunpack.c.l.b16 %v428
        %v877 = vunpack.c.l.b16 %v429
        %v878 = vunpack.c.l.b16 %v430
        %v879 = vunpack.c.l.b16 %v431
        %v880 = vunpack.c.l.b16 %v432
        %v881 = vunpack.c.l.b16 %v433
        %v882 = vunpack.c.l.b16 %v434
        %v883 = vunpack.c.l.b16 %v435
        %v884 = vunpack.c.l.b16 %v436
        %v885 = vunpack.c.l.b16 %v437
        %v886 = vunpack.c.l.b16 %v438
        %v887 = vunpack.c.l.b16 %v439
        %v888 = vunpack.c.l.b16 %v440
        %v889 = vunpack.c.l.b16 %v441
        %v890 = vunpack.c.l.b16 %v442
        %v891 = vunpack.c.l.b16 %v443
        %v892 = vunpack.c.l.b16 %v444
        %v893 = vunpack.c.l.b16 %v445
        %v894 = vunpack.c.l.b16 %v446
        %v895 = vunpack.c.l.b16 %v447
        %v896 = vunpack.c.l.b16 %v448
        %v897 = vunpack.c.l.b16 %v449
        %v898 = vunpack.c.l.b16 %v450
        %v899 = vunpack.c.l.b16 %v451
        %v900 = vunpack.c.l.b16 %v452
        %v901 = vunpack.c.l.b16 %v453
        %v902 = vunpack.c.l.b16 %v454
        %v903 = vunpack.c.l.b16 %v455
        %v904 = vunpack.c.l.b16 %v456
        %v905 = vunpack.c.l.b16 %v457
        %v906 = vunpack.c.l.b16 %v458
        %v907 = vunpack.c.l.b16 %v459
        %v908 = vunpack.c.l.b16 %v460
        %v909 = vunpack.c.l.b16 %v461
        %v910 = vunpack.c.l.b16 %v462
        %v911 = vunpack.c.l.b16 %v463
        %v912 = vunpack.c.l.b16 %v464
        %v913 = vunpack.c.l.b16 %v465
        %v914 = vunpack.c.l.b16 %v466
        %v915 = vunpack.c.l.b16 %v467
        %v916 = vunpack.c.l.b16 %v468
        %v917 = vunpack.c.l.b16 %v469
        %v918 = vunpack.c.l.b16 %v470
        %v919 = vpack.c.b16 %v856, %v855
        %v920 = vpack.c.b16 %v858, %v857
        %v921 = vpack.c.b16 %v860, %v859
        %v922 = vpack.c.b16 %v862, %v861
        %v923 = vpack.c.b16 %v864, %v863
        %v924 = vpack.c.b16 %v866, %v865
        %v925 = vpack.c.b16 %v868, %v867
        %v926 = vpack.c.b16 %v870, %v869
        %v927 = vpack.c.b16 %v872, %v871
        %v928 = vpack.c.b16 %v874, %v873
        %v929 = vpack.c.b16 %v876, %v875
        %v930 = vpack.c.b16 %v878, %v877
        %v931 = vpack.c.b16 %v880, %v879
        %v932 = vpack.c.b16 %v882, %v881
        %v933 = vpack.c.b16 %v884, %v883
        %v934 = vpack.c.b16 %v886, %v885
        %v935 = vpack.c.b16 %v888, %v887
        %v936 = vpack.c.b16 %v890, %v889
        %v937 = vpack.c.b16 %v892, %v891
        %v938 = vpack.c.b16 %v894, %v893
        %v939 = vpack.c.b16 %v896, %v895
        %v940 = vpack.c.b16 %v898, %v897
        %v941 = vpack.c.b16 %v900, %v899
        %v942 = vpack.c.b16 %v902, %v901
        %v943 = vpack.c.b16 %v904, %v903
        %v944 = vpack.c.b16 %v906, %v905
        %v945 = vpack.c.b16 %v908, %v907
        %v946 = vpack.c.b16 %v910, %v909
        %v947 = vpack.c.b16 %v912, %v911
        %v948 = vpack.c.b16 %v914, %v913
        %v949 = vpack.c.b16 %v916, %v915
        %v950 = vpack.c.b16 %v918, %v917
        %983 = vmatprep.subr.bf16.mxu0 0
        %984 = vmatpush1.bf16.msra.mxu0 %v919
        %985 = vmatprep.subr.bf16.mxu0 0
        %986 = vmatpush1.bf16.msra.mxu0 %v920
        %987 = vmatprep.subr.bf16.mxu0 0
        %988 = vmatpush1.bf16.msra.mxu0 %v921
        %989 = vmatprep.subr.bf16.mxu0 0
        %990 = vmatpush1.bf16.msra.mxu0 %v922
        %991 = vmatprep.subr.bf16.mxu0 0
        %992 = vmatpush1.bf16.msra.mxu0 %v923
        %993 = vmatprep.subr.bf16.mxu0 0
        %994 = vmatpush1.bf16.msra.mxu0 %v924
        %995 = vmatprep.subr.bf16.mxu0 0
        %996 = vmatpush1.bf16.msra.mxu0 %v925
        %997 = vmatprep.subr.bf16.mxu0 0
        %998 = vmatpush1.bf16.msra.mxu0 %v926
        %999 = vmatprep.subr.bf16.mxu0 0
        %1000 = vmatpush1.bf16.msra.mxu0 %v927
        %1001 = vmatprep.subr.bf16.mxu0 0
        %1002 = vmatpush1.bf16.msra.mxu0 %v928
        %1003 = vmatprep.subr.bf16.mxu0 0
        %1004 = vmatpush1.bf16.msra.mxu0 %v929
        %1005 = vmatprep.subr.bf16.mxu0 0
        %1006 = vmatpush1.bf16.msra.mxu0 %v930
        %1007 = vmatprep.subr.bf16.mxu0 0
        %1008 = vmatpush1.bf16.msra.mxu0 %v931
        %1009 = vmatprep.subr.bf16.mxu0 0
        %1010 = vmatpush1.bf16.msra.mxu0 %v932
        %1011 = vmatprep.subr.bf16.mxu0 0
        %1012 = vmatpush1.bf16.msra.mxu0 %v933
        %1013 = vmatprep.subr.bf16.mxu0 0
        %1014 = vmatpush1.bf16.msra.mxu0 %v934
        %1015 = vmatprep.mubr.bf16.mxu0 %v664
        %1016 = vmatmul.mubr.bf16.gmra.mrb[0].mxu0 %v663
        %v1017 = vpop.f32.mrb[0].mxu0
        %v1018 = vadd.f32 0.0, %v1017
        %v1019 = vpop.f32.mrb[0].mxu0
        %v1020 = vpop.f32.mrb[0].mxu0
        %v1021 = vadd.f32 0.0, %v1020
        %v1022 = vpop.f32.mrb[0].mxu0
        %1023 = vmatprep.mubr.bf16.mxu0 %v668
        %1024 = vmatmul.mubr.bf16.gmra.mrb[0].mxu0 %v667
        %v1025 = vpop.f32.mrb[0].mxu0
        %v1026 = vadd.f32 0.0, %v1025
        %v1027 = vpop.f32.mrb[0].mxu0
        %v1028 = vpop.f32.mrb[0].mxu0
        %v1029 = vadd.f32 0.0, %v1028
        %v1030 = vpop.f32.mrb[0].mxu0
        %1031 = vmatprep.mubr.bf16.mxu0 %v672
        %1032 = vmatmul.mubr.bf16.gmra.mrb[0].mxu0 %v671
        %v1033 = vpop.f32.mrb[0].mxu0
        %v1034 = vadd.f32 0.0, %v1033
        %v1035 = vpop.f32.mrb[0].mxu0
        %v1036 = vpop.f32.mrb[0].mxu0
        %v1037 = vadd.f32 0.0, %v1036
        %v1038 = vpop.f32.mrb[0].mxu0
        %1039 = vmatprep.mubr.bf16.mxu0 %v676
        %1040 = vmatmul.mubr.bf16.gmra.mrb[0].mxu0 %v675
        %v1041 = vpop.f32.mrb[0].mxu0
        %v1042 = vadd.f32 0.0, %v1041
        %v1043 = vpop.f32.mrb[0].mxu0
        %v1044 = vpop.f32.mrb[0].mxu0
        %v1045 = vadd.f32 0.0, %v1044
        %v1046 = vpop.f32.mrb[0].mxu0
        %1047 = vmatprep.mubr.bf16.mxu0 %v680
        %1048 = vmatmul.mubr.bf16.gmra.mrb[0].mxu0 %v679
        %v1049 = vpop.f32.mrb[0].mxu0
        %v1050 = vadd.f32 0.0, %v1049
        %v1051 = vpop.f32.mrb[0].mxu0
        %v1052 = vpop.f32.mrb[0].mxu0
        %v1053 = vadd.f32 0.0, %v1052
        %v1054 = vpop.f32.mrb[0].mxu0
        %1055 = vmatprep.mubr.bf16.mxu0 %v684
        %1056 = vmatmul.mubr.bf16.gmra.mrb[0].mxu0 %v683
        %v1057 = vpop.f32.mrb[0].mxu0
        %v1058 = vadd.f32 0.0, %v1057
        %v1059 = vpop.f32.mrb[0].mxu0
        %v1060 = vpop.f32.mrb[0].mxu0
        %v1061 = vadd.f32 0.0, %v1060
        %v1062 = vpop.f32.mrb[0].mxu0
        %1063 = vmatprep.mubr.bf16.mxu0 %v688
        %1064 = vmatmul.mubr.bf16.gmra.mrb[0].mxu0 %v687
        %v1065 = vpop.f32.mrb[0].mxu0
        %v1066 = vadd.f32 0.0, %v1065
        %v1067 = vpop.f32.mrb[0].mxu0
        %v1068 = vpop.f32.mrb[0].mxu0
        %v1069 = vadd.f32 0.0, %v1068
        %v1070 = vpop.f32.mrb[0].mxu0
        %1071 = vmatprep.mubr.bf16.mxu0 %v692
        %1072 = vmatmul.mubr.bf16.gmra.mrb[0].mxu0 %v691
        %v1073 = vpop.f32.mrb[0].mxu0
        %v1074 = vadd.f32 0.0, %v1073
        %v1075 = vpop.f32.mrb[0].mxu0
        %v1076 = vpop.f32.mrb[0].mxu0
        %v1077 = vadd.f32 0.0, %v1076
        %v1078 = vpop.f32.mrb[0].mxu0
        %1079 = vmatprep.mubr.bf16.mxu0 %v696
        %1080 = vmatmul.mubr.bf16.gmra.mrb[0].mxu0 %v695
        %v1081 = vpop.f32.mrb[0].mxu0
        %v1082 = vadd.f32 0.0, %v1081
        %v1083 = vpop.f32.mrb[0].mxu0
        %v1084 = vpop.f32.mrb[0].mxu0
        %v1085 = vadd.f32 0.0, %v1084
        %v1086 = vpop.f32.mrb[0].mxu0
        %1087 = vmatprep.mubr.bf16.mxu0 %v700
        %1088 = vmatmul.mubr.bf16.gmra.mrb[0].mxu0 %v699
        %v1089 = vpop.f32.mrb[0].mxu0
        %v1090 = vadd.f32 0.0, %v1089
        %v1091 = vpop.f32.mrb[0].mxu0
        %v1092 = vpop.f32.mrb[0].mxu0
        %v1093 = vadd.f32 0.0, %v1092
        %v1094 = vpop.f32.mrb[0].mxu0
        %1095 = vmatprep.mubr.bf16.mxu0 %v704
        %1096 = vmatmul.mubr.bf16.gmra.mrb[0].mxu0 %v703
        %v1097 = vpop.f32.mrb[0].mxu0
        %v1098 = vadd.f32 0.0, %v1097
        %v1099 = vpop.f32.mrb[0].mxu0
        %v1100 = vpop.f32.mrb[0].mxu0
        %v1101 = vadd.f32 0.0, %v1100
        %v1102 = vpop.f32.mrb[0].mxu0
        %1103 = vmatprep.mubr.bf16.mxu0 %v708
        %1104 = vmatmul.mubr.bf16.gmra.mrb[0].mxu0 %v707
        %v1105 = vpop.f32.mrb[0].mxu0
        %v1106 = vadd.f32 0.0, %v1105
        %v1107 = vpop.f32.mrb[0].mxu0
        %v1108 = vpop.f32.mrb[0].mxu0
        %v1109 = vadd.f32 0.0, %v1108
        %v1110 = vpop.f32.mrb[0].mxu0
        %1111 = vmatprep.mubr.bf16.mxu0 %v712
        %1112 = vmatmul.mubr.bf16.gmra.mrb[0].mxu0 %v711
        %v1113 = vpop.f32.mrb[0].mxu0
        %v1114 = vadd.f32 0.0, %v1113
        %v1115 = vpop.f32.mrb[0].mxu0
        %v1116 = vpop.f32.mrb[0].mxu0
        %v1117 = vadd.f32 0.0, %v1116
        %v1118 = vpop.f32.mrb[0].mxu0
        %1119 = vmatprep.mubr.bf16.mxu0 %v716
        %1120 = vmatmul.mubr.bf16.gmra.mrb[0].mxu0 %v715
        %v1121 = vpop.f32.mrb[0].mxu0
        %v1122 = vadd.f32 0.0, %v1121
        %v1123 = vpop.f32.mrb[0].mxu0
        %v1124 = vpop.f32.mrb[0].mxu0
        %v1125 = vadd.f32 0.0, %v1124
        %v1126 = vpop.f32.mrb[0].mxu0
        %1127 = vmatprep.mubr.bf16.mxu0 %v720
        %1128 = vmatmul.mubr.bf16.gmra.mrb[0].mxu0 %v719
        %v1129 = vpop.f32.mrb[0].mxu0
        %v1130 = vadd.f32 0.0, %v1129
        %v1131 = vpop.f32.mrb[0].mxu0
        %v1132 = vpop.f32.mrb[0].mxu0
        %v1133 = vadd.f32 0.0, %v1132
        %v1134 = vpop.f32.mrb[0].mxu0
        %1135 = vmatprep.mubr.bf16.mxu0 %v724
        %1136 = vmatmul.mubr.bf16.gmra.mrb[0].mxu0 %v723
        %v1137 = vpop.f32.mrb[0].mxu0
        %v1138 = vadd.f32 0.0, %v1137
        %v1139 = vpop.f32.mrb[0].mxu0
        %v1140 = vpop.f32.mrb[0].mxu0
        %v1141 = vadd.f32 0.0, %v1140
        %v1142 = vpop.f32.mrb[0].mxu0
        %1143 = vdwg.mxu0
        %1144 = vmatprep.subr.bf16.mxu0 0
        %1145 = vmatpush1.bf16.msra.mxu0 %v935
        %1146 = vmatprep.subr.bf16.mxu0 0
        %1147 = vmatpush1.bf16.msra.mxu0 %v936
        %1148 = vmatprep.subr.bf16.mxu0 0
        %1149 = vmatpush1.bf16.msra.mxu0 %v937
        %1150 = vmatprep.subr.bf16.mxu0 0
        %1151 = vmatpush1.bf16.msra.mxu0 %v938
        %1152 = vmatprep.subr.bf16.mxu0 0
        %1153 = vmatpush1.bf16.msra.mxu0 %v939
        %1154 = vmatprep.subr.bf16.mxu0 0
        %1155 = vmatpush1.bf16.msra.mxu0 %v940
        %1156 = vmatprep.subr.bf16.mxu0 0
        %1157 = vmatpush1.bf16.msra.mxu0 %v941
        %1158 = vmatprep.subr.bf16.mxu0 0
        %1159 = vmatpush1.bf16.msra.mxu0 %v942
        %1160 = vmatprep.subr.bf16.mxu0 0
        %1161 = vmatpush1.bf16.msra.mxu0 %v943
        %1162 = vmatprep.subr.bf16.mxu0 0
        %1163 = vmatpush1.bf16.msra.mxu0 %v944
        %1164 = vmatprep.subr.bf16.mxu0 0
        %1165 = vmatpush1.bf16.msra.mxu0 %v945
        %1166 = vmatprep.subr.bf16.mxu0 0
        %1167 = vmatpush1.bf16.msra.mxu0 %v946
        %1168 = vmatprep.subr.bf16.mxu0 0
        %1169 = vmatpush1.bf16.msra.mxu0 %v947
        %1170 = vmatprep.subr.bf16.mxu0 0
        %1171 = vmatpush1.bf16.msra.mxu0 %v948
        %1172 = vmatprep.subr.bf16.mxu0 0
        %1173 = vmatpush1.bf16.msra.mxu0 %v949
        %1174 = vmatprep.subr.bf16.mxu0 0
        %1175 = vmatpush1.bf16.msra.mxu0 %v950
        %1176 = vmatprep.mubr.bf16.mxu0 %v666
        %1177 = vmatmul.mubr.bf16.gmra.mrb[0].mxu0 %v665
        %v1178 = vpop.f32.mrb[0].mxu0
        %v1179 = vadd.f32 %v1018, %v1178
        %v1180 = vpop.f32.mrb[0].mxu0
        %v1181 = vpop.f32.mrb[0].mxu0
        %v1182 = vadd.f32 %v1021, %v1181
        %v1183 = vpop.f32.mrb[0].mxu0
        %1184 = vmatprep.mubr.bf16.mxu0 %v670
        %1185 = vmatmul.mubr.bf16.gmra.mrb[0].mxu0 %v669
        %v1186 = vpop.f32.mrb[0].mxu0
        %v1187 = vadd.f32 %v1026, %v1186
        %v1188 = vpop.f32.mrb[0].mxu0
        %v1189 = vpop.f32.mrb[0].mxu0
        %v1190 = vadd.f32 %v1029, %v1189
        %v1191 = vpop.f32.mrb[0].mxu0
        %1192 = vmatprep.mubr.bf16.mxu0 %v674
        %1193 = vmatmul.mubr.bf16.gmra.mrb[0].mxu0 %v673
        %v1194 = vpop.f32.mrb[0].mxu0
        %v1195 = vadd.f32 %v1034, %v1194
        %v1196 = vpop.f32.mrb[0].mxu0
        %v1197 = vpop.f32.mrb[0].mxu0
        %v1198 = vadd.f32 %v1037, %v1197
        %v1199 = vpop.f32.mrb[0].mxu0
        %1200 = vmatprep.mubr.bf16.mxu0 %v678
        %1201 = vmatmul.mubr.bf16.gmra.mrb[0].mxu0 %v677
        %v1202 = vpop.f32.mrb[0].mxu0
        %v1203 = vadd.f32 %v1042, %v1202
        %v1204 = vpop.f32.mrb[0].mxu0
        %v1205 = vpop.f32.mrb[0].mxu0
        %v1206 = vadd.f32 %v1045, %v1205
        %v1207 = vpop.f32.mrb[0].mxu0
        %1208 = vmatprep.mubr.bf16.mxu0 %v682
        %1209 = vmatmul.mubr.bf16.gmra.mrb[0].mxu0 %v681
        %v1210 = vpop.f32.mrb[0].mxu0
        %v1211 = vadd.f32 %v1050, %v1210
        %v1212 = vpop.f32.mrb[0].mxu0
        %v1213 = vpop.f32.mrb[0].mxu0
        %v1214 = vadd.f32 %v1053, %v1213
        %v1215 = vpop.f32.mrb[0].mxu0
        %1216 = vmatprep.mubr.bf16.mxu0 %v686
        %1217 = vmatmul.mubr.bf16.gmra.mrb[0].mxu0 %v685
        %v1218 = vpop.f32.mrb[0].mxu0
        %v1219 = vadd.f32 %v1058, %v1218
        %v1220 = vpop.f32.mrb[0].mxu0
        %v1221 = vpop.f32.mrb[0].mxu0
        %v1222 = vadd.f32 %v1061, %v1221
        %v1223 = vpop.f32.mrb[0].mxu0
        %1224 = vmatprep.mubr.bf16.mxu0 %v690
        %1225 = vmatmul.mubr.bf16.gmra.mrb[0].mxu0 %v689
        %v1226 = vpop.f32.mrb[0].mxu0
        %v1227 = vadd.f32 %v1066, %v1226
        %v1228 = vpop.f32.mrb[0].mxu0
        %v1229 = vpop.f32.mrb[0].mxu0
        %v1230 = vadd.f32 %v1069, %v1229
        %v1231 = vpop.f32.mrb[0].mxu0
        %1232 = vmatprep.mubr.bf16.mxu0 %v694
        %1233 = vmatmul.mubr.bf16.gmra.mrb[0].mxu0 %v693
        %v1234 = vpop.f32.mrb[0].mxu0
        %v1235 = vadd.f32 %v1074, %v1234
        %v1236 = vpop.f32.mrb[0].mxu0
        %v1237 = vpop.f32.mrb[0].mxu0
        %v1238 = vadd.f32 %v1077, %v1237
        %v1239 = vpop.f32.mrb[0].mxu0
        %1240 = vmatprep.mubr.bf16.mxu0 %v698
        %1241 = vmatmul.mubr.bf16.gmra.mrb[0].mxu0 %v697
        %v1242 = vpop.f32.mrb[0].mxu0
        %v1243 = vadd.f32 %v1082, %v1242
        %v1244 = vpop.f32.mrb[0].mxu0
        %v1245 = vpop.f32.mrb[0].mxu0
        %v1246 = vadd.f32 %v1085, %v1245
        %v1247 = vpop.f32.mrb[0].mxu0
        %1248 = vmatprep.mubr.bf16.mxu0 %v702
        %1249 = vmatmul.mubr.bf16.gmra.mrb[0].mxu0 %v701
        %v1250 = vpop.f32.mrb[0].mxu0
        %v1251 = vadd.f32 %v1090, %v1250
        %v1252 = vpop.f32.mrb[0].mxu0
        %v1253 = vpop.f32.mrb[0].mxu0
        %v1254 = vadd.f32 %v1093, %v1253
        %v1255 = vpop.f32.mrb[0].mxu0
        %1256 = vmatprep.mubr.bf16.mxu0 %v706
        %1257 = vmatmul.mubr.bf16.gmra.mrb[0].mxu0 %v705
        %v1258 = vpop.f32.mrb[0].mxu0
        %v1259 = vadd.f32 %v1098, %v1258
        %v1260 = vpop.f32.mrb[0].mxu0
        %v1261 = vpop.f32.mrb[0].mxu0
        %v1262 = vadd.f32 %v1101, %v1261
        %v1263 = vpop.f32.mrb[0].mxu0
        %1264 = vmatprep.mubr.bf16.mxu0 %v710
        %1265 = vmatmul.mubr.bf16.gmra.mrb[0].mxu0 %v709
        %v1266 = vpop.f32.mrb[0].mxu0
        %v1267 = vadd.f32 %v1106, %v1266
        %v1268 = vpop.f32.mrb[0].mxu0
        %v1269 = vpop.f32.mrb[0].mxu0
        %v1270 = vadd.f32 %v1109, %v1269
        %v1271 = vpop.f32.mrb[0].mxu0
        %1272 = vmatprep.mubr.bf16.mxu0 %v714
        %1273 = vmatmul.mubr.bf16.gmra.mrb[0].mxu0 %v713
        %v1274 = vpop.f32.mrb[0].mxu0
        %v1275 = vadd.f32 %v1114, %v1274
        %v1276 = vpop.f32.mrb[0].mxu0
        %v1277 = vpop.f32.mrb[0].mxu0
        %v1278 = vadd.f32 %v1117, %v1277
        %v1279 = vpop.f32.mrb[0].mxu0
        %1280 = vmatprep.mubr.bf16.mxu0 %v718
        %1281 = vmatmul.mubr.bf16.gmra.mrb[0].mxu0 %v717
        %v1282 = vpop.f32.mrb[0].mxu0
        %v1283 = vadd.f32 %v1122, %v1282
        %v1284 = vpop.f32.mrb[0].mxu0
        %v1285 = vpop.f32.mrb[0].mxu0
        %v1286 = vadd.f32 %v1125, %v1285
        %v1287 = vpop.f32.mrb[0].mxu0
        %1288 = vmatprep.mubr.bf16.mxu0 %v722
        %1289 = vmatmul.mubr.bf16.gmra.mrb[0].mxu0 %v721
        %v1290 = vpop.f32.mrb[0].mxu0
        %v1291 = vadd.f32 %v1130, %v1290
        %v1292 = vpop.f32.mrb[0].mxu0
        %v1293 = vpop.f32.mrb[0].mxu0
        %v1294 = vadd.f32 %v1133, %v1293
        %v1295 = vpop.f32.mrb[0].mxu0
        %1296 = vmatprep.mubr.bf16.mxu0 %v726
        %1297 = vmatmul.mubr.bf16.gmra.mrb[0].mxu0 %v725
        %v1298 = vpop.f32.mrb[0].mxu0
        %v1299 = vadd.f32 %v1138, %v1298
        %v1300 = vpop.f32.mrb[0].mxu0
        %v1301 = vpop.f32.mrb[0].mxu0
        %v1302 = vadd.f32 %v1141, %v1301
        %v1303 = vpop.f32.mrb[0].mxu0
        %1304 = vdwg.mxu0
        %v1305 = vadd.f32 %v311, %v1179
        %v1306 = vadd.f32 %v312, %v1182
        %v1307 = vadd.f32 %v313, %v1187
        %v1308 = vadd.f32 %v314, %v1190
        %v1309 = vadd.f32 %v315, %v1195
        %v1310 = vadd.f32 %v316, %v1198
        %v1311 = vadd.f32 %v317, %v1203
        %v1312 = vadd.f32 %v318, %v1206
        %v1313 = vadd.f32 %v319, %v1211
        %v1314 = vadd.f32 %v320, %v1214
        %v1315 = vadd.f32 %v321, %v1219
        %v1316 = vadd.f32 %v322, %v1222
        %v1317 = vadd.f32 %v323, %v1227
        %v1318 = vadd.f32 %v324, %v1230
        %v1319 = vadd.f32 %v325, %v1235
        %v1320 = vadd.f32 %v326, %v1238
        %v1321 = vadd.f32 %v327, %v1243
        %v1322 = vadd.f32 %v328, %v1246
        %v1323 = vadd.f32 %v329, %v1251
        %v1324 = vadd.f32 %v330, %v1254
        %v1325 = vadd.f32 %v331, %v1259
        %v1326 = vadd.f32 %v332, %v1262
        %v1327 = vadd.f32 %v333, %v1267
        %v1328 = vadd.f32 %v334, %v1270
        %v1329 = vadd.f32 %v335, %v1275
        %v1330 = vadd.f32 %v336, %v1278
        %v1331 = vadd.f32 %v337, %v1283
        %v1332 = vadd.f32 %v338, %v1286
        %v1333 = vadd.f32 %v339, %v1291
        %v1334 = vadd.f32 %v340, %v1294
        %v1335 = vadd.f32 %v341, %v1299
        %v1336 = vadd.f32 %v342, %v1302
        %vm1337 = vcmask 523264
        %1338 = vst.msk [vmem:[#allocation2] sm:$0xff] %vm1337, %v1305
        %1339 = vst.msk [vmem:[#allocation2 + $0x8] sm:$0xff] %vm1337, %v1306
        %1340 = vst.msk [vmem:[#allocation2 + $0x10] sm:$0xff] %vm1337, %v1307
        %1341 = vst.msk [vmem:[#allocation2 + $0x18] sm:$0xff] %vm1337, %v1308
        %1342 = vst.msk [vmem:[#allocation2 + $0x20] sm:$0xff] %vm1337, %v1309
        %1343 = vst.msk [vmem:[#allocation2 + $0x28] sm:$0xff] %vm1337, %v1310
        %1344 = vst.msk [vmem:[#allocation2 + $0x30] sm:$0xff] %vm1337, %v1311
        %1345 = vst.msk [vmem:[#allocation2 + $0x38] sm:$0xff] %vm1337, %v1312
        %1346 = vst.msk [vmem:[#allocation2 + $0x40] sm:$0xff] %vm1337, %v1313
        %1347 = vst.msk [vmem:[#allocation2 + $0x48] sm:$0xff] %vm1337, %v1314
        %1348 = vst.msk [vmem:[#allocation2 + $0x50] sm:$0xff] %vm1337, %v1315
        %1349 = vst.msk [vmem:[#allocation2 + $0x58] sm:$0xff] %vm1337, %v1316
        %1350 = vst.msk [vmem:[#allocation2 + $0x60] sm:$0xff] %vm1337, %v1317
        %1351 = vst.msk [vmem:[#allocation2 + $0x68] sm:$0xff] %vm1337, %v1318
        %1352 = vst.msk [vmem:[#allocation2 + $0x70] sm:$0xff] %vm1337, %v1319
        %1353 = vst.msk [vmem:[#allocation2 + $0x78] sm:$0xff] %vm1337, %v1320
        %1354 = vst.msk [vmem:[#allocation2 + $0x80] sm:$0xff] %vm1337, %v1321
        %1355 = vst.msk [vmem:[#allocation2 + $0x88] sm:$0xff] %vm1337, %v1322
        %1356 = vst.msk [vmem:[#allocation2 + $0x90] sm:$0xff] %vm1337, %v1323
        %1357 = vst.msk [vmem:[#allocation2 + $0x98] sm:$0xff] %vm1337, %v1324
        %1358 = vst.msk [vmem:[#allocation2 + $0xa0] sm:$0xff] %vm1337, %v1325
        %1359 = vst.msk [vmem:[#allocation2 + $0xa8] sm:$0xff] %vm1337, %v1326
        %1360 = vst.msk [vmem:[#allocation2 + $0xb0] sm:$0xff] %vm1337, %v1327
        %1361 = vst.msk [vmem:[#allocation2 + $0xb8] sm:$0xff] %vm1337, %v1328
        %1362 = vst.msk [vmem:[#allocation2 + $0xc0] sm:$0xff] %vm1337, %v1329
        %1363 = vst.msk [vmem:[#allocation2 + $0xc8] sm:$0xff] %vm1337, %v1330
        %1364 = vst.msk [vmem:[#allocation2 + $0xd0] sm:$0xff] %vm1337, %v1331
        %1365 = vst.msk [vmem:[#allocation2 + $0xd8] sm:$0xff] %vm1337, %v1332
        %1366 = vst.msk [vmem:[#allocation2 + $0xe0] sm:$0xff] %vm1337, %v1333
        %1367 = vst.msk [vmem:[#allocation2 + $0xe8] sm:$0xff] %vm1337, %v1334
        %1368 = vst.msk [vmem:[#allocation2 + $0xf0] sm:$0xff] %vm1337, %v1335
        %1369 = vst.msk [vmem:[#allocation2 + $0xf8] sm:$0xff] %vm1337, %v1336
        // Predicated region
        $region41: #{tpu_custom_call.1} parent=31 // pred_check
          %p1370 = pneg %p274
        $region42: #{tpu_custom_call.1} parent=31 // pred_check_branch
          %1372 = sbr.rel (%p1370) target = $region44
        $region43: #{tpu_custom_call.1} parent=31 // pred_region
          %v1373 = vld [vmem:[#allocation2] sm:$0xff]
          %v1374 = vld [vmem:[#allocation2 + $0x8] sm:$0xff]
          %v1375 = vld [vmem:[#allocation2 + $0x10] sm:$0xff]
          %v1376 = vld [vmem:[#allocation2 + $0x18] sm:$0xff]
          %v1377 = vld [vmem:[#allocation2 + $0x20] sm:$0xff]
          %v1378 = vld [vmem:[#allocation2 + $0x28] sm:$0xff]
          %v1379 = vld [vmem:[#allocation2 + $0x30] sm:$0xff]
          %v1380 = vld [vmem:[#allocation2 + $0x38] sm:$0xff]
          %v1381 = vld [vmem:[#allocation2 + $0x40] sm:$0xff]
          %v1382 = vld [vmem:[#allocation2 + $0x48] sm:$0xff]
          %v1383 = vld [vmem:[#allocation2 + $0x50] sm:$0xff]
          %v1384 = vld [vmem:[#allocation2 + $0x58] sm:$0xff]
          %v1385 = vld [vmem:[#allocation2 + $0x60] sm:$0xff]
          %v1386 = vld [vmem:[#allocation2 + $0x68] sm:$0xff]
          %v1387 = vld [vmem:[#allocation2 + $0x70] sm:$0xff]
          %v1388 = vld [vmem:[#allocation2 + $0x78] sm:$0xff]
          %v1389 = vld [vmem:[#allocation2 + $0x80] sm:$0xff]
          %v1390 = vld [vmem:[#allocation2 + $0x88] sm:$0xff]
          %v1391 = vld [vmem:[#allocation2 + $0x90] sm:$0xff]
          %v1392 = vld [vmem:[#allocation2 + $0x98] sm:$0xff]
          %v1393 = vld [vmem:[#allocation2 + $0xa0] sm:$0xff]
          %v1394 = vld [vmem:[#allocation2 + $0xa8] sm:$0xff]
          %v1395 = vld [vmem:[#allocation2 + $0xb0] sm:$0xff]
          %v1396 = vld [vmem:[#allocation2 + $0xb8] sm:$0xff]
          %v1397 = vld [vmem:[#allocation2 + $0xc0] sm:$0xff]
          %v1398 = vld [vmem:[#allocation2 + $0xc8] sm:$0xff]
          %v1399 = vld [vmem:[#allocation2 + $0xd0] sm:$0xff]
          %v1400 = vld [vmem:[#allocation2 + $0xd8] sm:$0xff]
          %v1401 = vld [vmem:[#allocation2 + $0xe0] sm:$0xff]
          %v1402 = vld [vmem:[#allocation2 + $0xe8] sm:$0xff]
          %v1403 = vld [vmem:[#allocation2 + $0xf0] sm:$0xff]
          %v1404 = vld [vmem:[#allocation2 + $0xf8] sm:$0xff]
          %v1405 = vld [vmem:[%s263] sm:$0x1]
          %v1407 = vlaneseq
          %v1408 = vshrl.u32 %v1407, 7
          %v1409 = vsub.s32 0, %v1408
          %v1410 = vrot.slane %v1405, %v1409
          %v1412 = vadd.f32 %v1373, %v1410
          %v1413 = vadd.f32 %v1374, %v1410
          %v1414 = vadd.f32 %v1375, %v1410
          %v1415 = vadd.f32 %v1376, %v1410
          %v1416 = vadd.f32 %v1377, %v1410
          %v1417 = vadd.f32 %v1378, %v1410
          %v1418 = vadd.f32 %v1379, %v1410
          %v1419 = vadd.f32 %v1380, %v1410
          %v1420 = vadd.f32 %v1381, %v1410
          %v1421 = vadd.f32 %v1382, %v1410
          %v1422 = vadd.f32 %v1383, %v1410
          %v1423 = vadd.f32 %v1384, %v1410
          %v1424 = vadd.f32 %v1385, %v1410
          %v1425 = vadd.f32 %v1386, %v1410
          %v1426 = vadd.f32 %v1387, %v1410
          %v1427 = vadd.f32 %v1388, %v1410
          %v1428 = vadd.f32 %v1389, %v1410
          %v1429 = vadd.f32 %v1390, %v1410
          %v1430 = vadd.f32 %v1391, %v1410
          %v1431 = vadd.f32 %v1392, %v1410
          %v1432 = vadd.f32 %v1393, %v1410
          %v1433 = vadd.f32 %v1394, %v1410
          %v1434 = vadd.f32 %v1395, %v1410
          %v1435 = vadd.f32 %v1396, %v1410
          %v1436 = vadd.f32 %v1397, %v1410
          %v1437 = vadd.f32 %v1398, %v1410
          %v1438 = vadd.f32 %v1399, %v1410
          %v1439 = vadd.f32 %v1400, %v1410
          %v1440 = vadd.f32 %v1401, %v1410
          %v1441 = vadd.f32 %v1402, %v1410
          %v1442 = vadd.f32 %v1403, %v1410
          %v1443 = vadd.f32 %v1404, %v1410
          %v1444 = vmax.f32 %v1412, 0.0
          %v1445 = vmax.f32 %v1413, 0.0
          %v1446 = vmax.f32 %v1414, 0.0
          %v1447 = vmax.f32 %v1415, 0.0
          %v1448 = vmax.f32 %v1416, 0.0
          %v1449 = vmax.f32 %v1417, 0.0
          %v1450 = vmax.f32 %v1418, 0.0
          %v1451 = vmax.f32 %v1419, 0.0
          %v1452 = vmax.f32 %v1420, 0.0
          %v1453 = vmax.f32 %v1421, 0.0
          %v1454 = vmax.f32 %v1422, 0.0
          %v1455 = vmax.f32 %v1423, 0.0
          %v1456 = vmax.f32 %v1424, 0.0
          %v1457 = vmax.f32 %v1425, 0.0
          %v1458 = vmax.f32 %v1426, 0.0
          %v1459 = vmax.f32 %v1427, 0.0
          %v1460 = vmax.f32 %v1428, 0.0
          %v1461 = vmax.f32 %v1429, 0.0
          %v1462 = vmax.f32 %v1430, 0.0
          %v1463 = vmax.f32 %v1431, 0.0
          %v1464 = vmax.f32 %v1432, 0.0
          %v1465 = vmax.f32 %v1433, 0.0
          %v1466 = vmax.f32 %v1434, 0.0
          %v1467 = vmax.f32 %v1435, 0.0
          %v1468 = vmax.f32 %v1436, 0.0
          %v1469 = vmax.f32 %v1437, 0.0
          %v1470 = vmax.f32 %v1438, 0.0
          %v1471 = vmax.f32 %v1439, 0.0
          %v1472 = vmax.f32 %v1440, 0.0
          %v1473 = vmax.f32 %v1441, 0.0
          %v1474 = vmax.f32 %v1442, 0.0
          %v1475 = vmax.f32 %v1443, 0.0
          %v1476 = vpack.c.bf16 %v1445, %v1444
          %v1477 = vpack.c.bf16 %v1447, %v1446
          %v1478 = vpack.c.bf16 %v1449, %v1448
          %v1479 = vpack.c.bf16 %v1451, %v1450
          %v1480 = vpack.c.bf16 %v1453, %v1452
          %v1481 = vpack.c.bf16 %v1455, %v1454
          %v1482 = vpack.c.bf16 %v1457, %v1456
          %v1483 = vpack.c.bf16 %v1459, %v1458
          %v1484 = vpack.c.bf16 %v1461, %v1460
          %v1485 = vpack.c.bf16 %v1463, %v1462
          %v1486 = vpack.c.bf16 %v1465, %v1464
          %v1487 = vpack.c.bf16 %v1467, %v1466
          %v1488 = vpack.c.bf16 %v1469, %v1468
          %v1489 = vpack.c.bf16 %v1471, %v1470
          %v1490 = vpack.c.bf16 %v1473, %v1472
          %v1491 = vpack.c.bf16 %v1475, %v1474
          %v1508 = vunpack.c.l.b16 %v1476
          %v1509 = vunpack.c.h.b16 %v1476
          %v1510 = vunpack.c.l.b16 %v1477
          %v1511 = vunpack.c.h.b16 %v1477
          %v1512 = vunpack.c.l.b16 %v1478
          %v1513 = vunpack.c.h.b16 %v1478
          %v1514 = vunpack.c.l.b16 %v1479
          %v1515 = vunpack.c.h.b16 %v1479
          %v1516 = vunpack.c.l.b16 %v1480
          %v1517 = vunpack.c.h.b16 %v1480
          %v1518 = vunpack.c.l.b16 %v1481
          %v1519 = vunpack.c.h.b16 %v1481
          %v1520 = vunpack.c.l.b16 %v1482
          %v1521 = vunpack.c.h.b16 %v1482
          %v1522 = vunpack.c.l.b16 %v1483
          %v1523 = vunpack.c.h.b16 %v1483
          %v1524 = vunpack.c.l.b16 %v1484
          %v1525 = vunpack.c.h.b16 %v1484
          %v1526 = vunpack.c.l.b16 %v1485
          %v1527 = vunpack.c.h.b16 %v1485
          %v1528 = vunpack.c.l.b16 %v1486
          %v1529 = vunpack.c.h.b16 %v1486
          %v1530 = vunpack.c.l.b16 %v1487
          %v1531 = vunpack.c.h.b16 %v1487
          %v1532 = vunpack.c.l.b16 %v1488
          %v1533 = vunpack.c.h.b16 %v1488
          %v1534 = vunpack.c.l.b16 %v1489
          %v1535 = vunpack.c.h.b16 %v1489
          %v1536 = vunpack.c.l.b16 %v1490
          %v1537 = vunpack.c.h.b16 %v1490
          %v1538 = vunpack.c.l.b16 %v1491
          %v1539 = vunpack.c.h.b16 %v1491
          %v1540 = vpack.c.b16 %v1508, %v1508
          %v1541 = vpack.c.b16 %v1509, %v1509
          %v1542 = vpack.c.b16 %v1510, %v1510
          %v1543 = vpack.c.b16 %v1511, %v1511
          %v1544 = vpack.c.b16 %v1512, %v1512
          %v1545 = vpack.c.b16 %v1513, %v1513
          %v1546 = vpack.c.b16 %v1514, %v1514
          %v1547 = vpack.c.b16 %v1515, %v1515
          %v1548 = vpack.c.b16 %v1516, %v1516
          %v1549 = vpack.c.b16 %v1517, %v1517
          %v1550 = vpack.c.b16 %v1518, %v1518
          %v1551 = vpack.c.b16 %v1519, %v1519
          %v1552 = vpack.c.b16 %v1520, %v1520
          %v1553 = vpack.c.b16 %v1521, %v1521
          %v1554 = vpack.c.b16 %v1522, %v1522
          %v1555 = vpack.c.b16 %v1523, %v1523
          %v1556 = vpack.c.b16 %v1524, %v1524
          %v1557 = vpack.c.b16 %v1525, %v1525
          %v1558 = vpack.c.b16 %v1526, %v1526
          %v1559 = vpack.c.b16 %v1527, %v1527
          %v1560 = vpack.c.b16 %v1528, %v1528
          %v1561 = vpack.c.b16 %v1529, %v1529
          %v1562 = vpack.c.b16 %v1530, %v1530
          %v1563 = vpack.c.b16 %v1531, %v1531
          %v1564 = vpack.c.b16 %v1532, %v1532
          %v1565 = vpack.c.b16 %v1533, %v1533
          %v1566 = vpack.c.b16 %v1534, %v1534
          %v1567 = vpack.c.b16 %v1535, %v1535
          %v1568 = vpack.c.b16 %v1536, %v1536
          %v1569 = vpack.c.b16 %v1537, %v1537
          %v1570 = vpack.c.b16 %v1538, %v1538
          %v1571 = vpack.c.b16 %v1539, %v1539
          %vm1604 = vcmask 519168
          %1605 = vst.msk [vmem:[%s271] sm:$0xf] %vm1604, %v1540
          %1606 = vst.msk [vmem:[%s271 + $0x4] sm:$0xf] %vm1604, %v1541
          %1607 = vst.msk [vmem:[%s271 + $0x8] sm:$0xf] %vm1604, %v1542
          %1608 = vst.msk [vmem:[%s271 + $0xc] sm:$0xf] %vm1604, %v1543
          %1609 = vst.msk [vmem:[%s271 + $0x10] sm:$0xf] %vm1604, %v1544
          %1610 = vst.msk [vmem:[%s271 + $0x14] sm:$0xf] %vm1604, %v1545
          %1611 = vst.msk [vmem:[%s271 + $0x18] sm:$0xf] %vm1604, %v1546
          %1612 = vst.msk [vmem:[%s271 + $0x1c] sm:$0xf] %vm1604, %v1547
          %1613 = vst.msk [vmem:[%s271 + $0x20] sm:$0xf] %vm1604, %v1548
          %1614 = vst.msk [vmem:[%s271 + $0x24] sm:$0xf] %vm1604, %v1549
          %1615 = vst.msk [vmem:[%s271 + $0x28] sm:$0xf] %vm1604, %v1550
          %1616 = vst.msk [vmem:[%s271 + $0x2c] sm:$0xf] %vm1604, %v1551
          %1617 = vst.msk [vmem:[%s271 + $0x30] sm:$0xf] %vm1604, %v1552
          %1618 = vst.msk [vmem:[%s271 + $0x34] sm:$0xf] %vm1604, %v1553
          %1619 = vst.msk [vmem:[%s271 + $0x38] sm:$0xf] %vm1604, %v1554
          %1620 = vst.msk [vmem:[%s271 + $0x3c] sm:$0xf] %vm1604, %v1555
          %1621 = vst.msk [vmem:[%s271 + $0x40] sm:$0xf] %vm1604, %v1556
          %1622 = vst.msk [vmem:[%s271 + $0x44] sm:$0xf] %vm1604, %v1557
          %1623 = vst.msk [vmem:[%s271 + $0x48] sm:$0xf] %vm1604, %v1558
          %1624 = vst.msk [vmem:[%s271 + $0x4c] sm:$0xf] %vm1604, %v1559
          %1625 = vst.msk [vmem:[%s271 + $0x50] sm:$0xf] %vm1604, %v1560
          %1626 = vst.msk [vmem:[%s271 + $0x54] sm:$0xf] %vm1604, %v1561
          %1627 = vst.msk [vmem:[%s271 + $0x58] sm:$0xf] %vm1604, %v1562
          %1628 = vst.msk [vmem:[%s271 + $0x5c] sm:$0xf] %vm1604, %v1563
          %1629 = vst.msk [vmem:[%s271 + $0x60] sm:$0xf] %vm1604, %v1564
          %1630 = vst.msk [vmem:[%s271 + $0x64] sm:$0xf] %vm1604, %v1565
          %1631 = vst.msk [vmem:[%s271 + $0x68] sm:$0xf] %vm1604, %v1566
          %1632 = vst.msk [vmem:[%s271 + $0x6c] sm:$0xf] %vm1604, %v1567
          %1633 = vst.msk [vmem:[%s271 + $0x70] sm:$0xf] %vm1604, %v1568
          %1634 = vst.msk [vmem:[%s271 + $0x74] sm:$0xf] %vm1604, %v1569
          %1635 = vst.msk [vmem:[%s271 + $0x78] sm:$0xf] %vm1604, %v1570
          %1636 = vst.msk [vmem:[%s271 + $0x7c] sm:$0xf] %vm1604, %v1571
        $region44: #{tpu_custom_call.1} parent=31 // pred_fallthru
          _
        %s1637 = smul.u32 32, %s22
        %p1638 = scmp.lt.s32.totalorder %s1637, 127
        %s1639 = scalar_select %p1638, %s1637, 127
        %p1640 = scmp.lt.s32.totalorder %s23, 0
        %s1641 = scalar_select %p1640, %s23, 0
        %s1642 = sadd.s32 %s1641, %s1639
        %s1643 = smul.addr %s1642, 4
        %s1644 = scalar_lea.vmem %s3, %s1643
        // Predicated region
        $region45: #{tpu_custom_call.1} parent=31 // pred_check
          %p1645 = pneg %p138
        $region46: #{tpu_custom_call.1} parent=31 // pred_check_branch
          %1647 = sbr.rel (%p1645) target = $region48
        $region47: #{tpu_custom_call.1} parent=31 // pred_region
          %s1648 = smul.u32 32, %s22
        $region48: #{tpu_custom_call.1} parent=31 // pred_fallthru
          _
      $region32: #{tpu_custom_call.1} parent=5 // pred_fallthru
        _
      %p1649 = scmp.le.s32.totalorder 2, %s12
      // Predicated region
      $region49: #{tpu_custom_call.1} parent=5 // pred_check
        %p1650 = pneg %p1649
      $region50: #{tpu_custom_call.1} parent=5 // pred_check_branch
        %1652 = sbr.rel (%p1650) target = $region52
      $region51: #{tpu_custom_call.1} parent=5 // pred_region
        %s1653 = ssub.s32 %s12, 2
        // Predicated region
        $region53: #{tpu_custom_call.1} parent=51 // pred_check
          %p1654 = pneg %p144
        $region54: #{tpu_custom_call.1} parent=51 // pred_check_branch
          %1656 = sbr.rel (%p1654) target = $region56
        $region55: #{tpu_custom_call.1} parent=51 // pred_region
          %s1657 = smul.u32 32, %s25
          %p1658 = scmp.lt.s32.totalorder %s1657, 127
          %s1659 = scalar_select %p1658, %s1657, 127
          %p1660 = scmp.lt.s32.totalorder %s26, 0
          %s1661 = scalar_select %p1660, %s26, 0
          %s1662 = sadd.s32 %s1661, %s1659
          %s1663 = smul.addr %s1662, 4
          %s1664 = scalar_lea.vmem %s3, %s1663
        $region56: #{tpu_custom_call.1} parent=51 // pred_fallthru
          _
      $region52: #{tpu_custom_call.1} parent=5 // pred_fallthru
        _
    $region6: #{tpu_custom_call.1} parent=1 // loop_footer
      %s16 = sadd.s32 1, %s12
    $region7: #{tpu_custom_call.1} parent=1 // loop_footer_branch
      %11 = sbr.rel target = $region3
    $region8: #{tpu_custom_call.1} parent=1 // loop_exit
      _
    %1665 = vsyncpa [#allocation4], 1
    %s1666 = scalar_lea.sflag [#allocation4], 1
    %1667 = vsyncpa %s1666, 1

</llo_original>
